<compile_context>
chip_gen: v7x
topology: tpu7x:2x2x1
jax: 0.10.0
libtpu: 0.0.40
codegen_flags: <defaults>
</compile_context>

<pallas_src>
import functools
import math

import jax
import jax.numpy as jnp
import numpy as np
from jax.experimental import pallas as pl
from jax.experimental.pallas import tpu as pltpu


def _round_up(x, m):
    return -(-x // m) * m


# ----------------------------------------------------------------------------
# host-side: bilinear (align_corners=True) interpolation matrix, matches F.interpolate
# ----------------------------------------------------------------------------
def _bilinear_matrix(out_size: int, in_size: int) -> np.ndarray:
    if out_size == 1:
        A = np.zeros((1, in_size), np.float64)
        A[0, 0] = 1.0
        return A
    src = np.arange(out_size, dtype=np.float64) * (in_size - 1) / (out_size - 1)
    lo = np.clip(np.floor(src).astype(np.int64), 0, in_size - 1)
    hi = np.clip(lo + 1, 0, in_size - 1)
    w_hi = src - lo
    w_lo = 1.0 - w_hi
    A = np.zeros((out_size, in_size), np.float64)
    A[np.arange(out_size), lo] += w_lo
    A[np.arange(out_size), hi] += w_hi
    return A


# ----------------------------------------------------------------------------
# fused kernel
#   x_ref     : (1, chunk, 3*HW)      uint8    image chunk, flat channel-major pixels
#   bpool_ref : (3*HW, 3*P_pad)       bfloat16 block-diag resize+pool (+1/255) matrix
#   w2_ref    : (3*P_pad, C*P_pad)    float32  per-part channel projection
#   sel_ref   : (C*P_pad, P_pad)      float32  part selector (column j -> part j % P_pad)
#   o_ref     : (1, chunk, C*P_pad)   float32  normalized part features (lane-dense)
# ----------------------------------------------------------------------------
def _pcb_fused_kernel(x_ref, bpool_ref, w2_ref, sel_ref, o_ref, *, sqrt_num, eps):
    # uint8 -> f32 -> bf16 (exact for 0..255); bf16 hits the native MXU path.
    x = x_ref[0].astype(jnp.float32).astype(jnp.bfloat16)              # (chunk, 3*HW)
    # one fused matmul over K = 3*HW: resize + width-mean + stripe-pool + 1/255
    pooled = jnp.dot(x, bpool_ref[...],
                     preferred_element_type=jnp.float32)               # (chunk, 3*P_pad)
    # tiny per-part channel projection (K = 3*P_pad), f32
    raw = jnp.dot(pooled, w2_ref[...],
                  preferred_element_type=jnp.float32)                  # (chunk, C*P_pad)
    # per-part squared L2 norm over channels (column j belongs to part j % P_pad)
    ssq = jnp.dot(raw * raw, sel_ref[...],
                  preferred_element_type=jnp.float32)                  # (chunk, P_pad)
    inv = jax.lax.rsqrt(ssq * jnp.float32(sqrt_num) + jnp.float32(eps))  # EUP rsqrt
    # lane-replicate the P_pad inverse norms across all C channel groups
    reps = o_ref.shape[-1] // inv.shape[-1]
    inv_full = jnp.concatenate([inv] * reps, axis=-1)                  # (chunk, C*P_pad)
    o_ref[0] = raw * inv_full


class PCBReIDMetricPallas:
    """Forward-only PCBReIDMetric (bboxs=None path) with a fused Pallas TPU kernel."""

    def __init__(self, feat_dim=32, height=24, width=12, num_parts=6, seed=42):
        assert height % num_parts == 0
        self.height, self.width = height, width
        self.num_parts = num_parts
        self.feat_dim = feat_dim
        self.p_pad = 8                       # parts padded to 8 -> lane-dense C*8 output
        assert num_parts <= self.p_pad
        # deterministic synthetic backbone weights (stand-in for the checkpoint).
        key = jax.random.PRNGKey(seed)
        self.w_proj = (np.asarray(jax.random.normal(key, (feat_dim, 3), jnp.float32))
                       / np.float32(math.sqrt(3.0))).astype(np.float32)
        self._cache = {}

    # -- host-side composition of the linear stages into two small matrices -----------
    def _compose(self, H0, W0, ignore_head):
        key = (H0, W0, bool(ignore_head))
        if key in self._cache:
            return self._cache[key]
        Hout, Wout, P, C = self.height, self.width, self.num_parts, self.feat_dim
        p_pad = self.p_pad
        a_h = _bilinear_matrix(Hout, H0)                    # (Hout, H0)
        a_w = _bilinear_matrix(Wout, W0)                    # (Wout, W0)
        hp = Hout // P
        ph = a_h.reshape(P, hp, H0).mean(axis=1)            # stripe pooling folded into A_h
        wv = a_w.mean(axis=0) / 255.0                       # width mean + 1/255 folded in
        if ignore_head:
            ph = ph[1:]                                     # head drop folded in
        p_eff = ph.shape[0]
        hw = H0 * W0
        # pool_hw[i*W0+j, p] = ph[p, i] * wv[j]
        pool_hw = np.einsum('pi,j->ijp', ph, wv).reshape(hw, p_eff)
        # block-diagonal resize/pool matrix: (3*HW, 3*P_pad), zero-padded parts
        bpool = np.zeros((3, hw, 3, p_pad), np.float64)
        for c in range(3):
            bpool[c, :, c, :p_eff] = pool_hw
        bpool = bpool.reshape(3 * hw, 3 * p_pad)
        # channel projection: w2[c*P_pad + p, k*P_pad + p] = w_proj[k, c]  (p < p_eff)
        w2 = np.zeros((3, p_pad, C, p_pad), np.float64)
        wT = self.w_proj.T.astype(np.float64)               # (3, C)
        for p in range(p_eff):
            w2[:, p, :, p] = wT
        w2 = w2.reshape(3 * p_pad, C * p_pad)
        # part selector: column j of raw contributes to part j % P_pad
        sel = np.zeros((C * p_pad, p_pad), np.float32)
        sel[np.arange(C * p_pad), np.arange(C * p_pad) % p_pad] = 1.0
        res = (jnp.asarray(bpool, dtype=jnp.bfloat16),      # bf16: half HBM/VMEM traffic
               jnp.asarray(w2, dtype=jnp.float32),
               jnp.asarray(sel, dtype=jnp.float32),
               p_eff)
        self._cache[key] = res
        return res

    def __call__(self, images, bboxs=None, ignore_head=False):
        if bboxs is not None:
            # TODO(synk): per-image data-dependent bbox crop + mean/std normalize path
            # not implemented (variable-size dynamic crops).
            raise NotImplementedError("bboxs path not implemented")
        assert images.ndim == 4 and images.shape[1] == 3 and images.dtype == jnp.uint8
        bs, _, H0, W0 = images.shape
        C, p_pad = self.feat_dim, self.p_pad
        hw = H0 * W0
        cp_pad = C * p_pad
        bpool, w2, sel, p_eff = self._compose(H0, W0, ignore_head)
        sqrt_num = 5 if ignore_head else 6

        # ---- batch chunking: largest 32-aligned chunk that fits the VMEM budget -----
        row_bytes = (2 * 3 * hw            # uint8 input block, double-buffered
                     + 4 * 3 * hw          # in-kernel f32 cast transient
                     + 2 * 3 * hw          # bf16 matmul operand
                     + 2 * cp_pad * 4      # f32 output block, double-buffered
                     + 3 * cp_pad * 4)     # raw / raw^2 / normalized intermediates
        weight_bytes = int(2 * (bpool.size * 2 + w2.size * 4 + sel.size * 4))
        budget = 24 * 1024 * 1024          # per-step working-set budget (safe on v7x 64 MiB)
        # TODO(synk): for extremely large H0*W0 the pooling matrix itself dominates VMEM;
        # would need K-tiling of the first matmul in that regime.
        max_chunk = max(32, int((budget - weight_bytes) // max(row_bytes, 1)) // 32 * 32)
        chunk = int(min(256, max_chunk, _round_up(bs, 32)))
        nc = -(-bs // chunk)
        chunk = int(min(chunk, _round_up(-(-bs // nc), 32)))   # rebalance to cut padding
        bs_pad = nc * chunk
        if bs_pad != bs:
            images = jnp.concatenate(
                [images, jnp.zeros((bs_pad - bs, 3, H0, W0), jnp.uint8)], axis=0)
        # free contiguous reshape (no transpose): (bs_pad, 3, H0, W0) -> (nc, chunk, 3*HW)
        x3 = images.reshape(nc, chunk, 3 * hw)

        vmem_limit = int(min(48 << 20,
                             max(32 << 20,
                                 2 * (weight_bytes + chunk * row_bytes) + (4 << 20))))

        out = pl.pallas_call(
            functools.partial(_pcb_fused_kernel, sqrt_num=sqrt_num, eps=1e-12),
            out_shape=jax.ShapeDtypeStruct((nc, chunk, cp_pad), jnp.float32),
            grid=(nc,),
            in_specs=[
                pl.BlockSpec((1, chunk, 3 * hw), lambda i: (i, 0, 0)),
                pl.BlockSpec((3 * hw, 3 * p_pad), lambda i: (0, 0)),   # grid-invariant
                pl.BlockSpec((3 * p_pad, cp_pad), lambda i: (0, 0)),   # grid-invariant
                pl.BlockSpec((cp_pad, p_pad), lambda i: (0, 0)),       # grid-invariant
            ],
            out_specs=pl.BlockSpec((1, chunk, cp_pad), lambda i: (i, 0, 0)),
            compiler_params=pltpu.CompilerParams(
                dimension_semantics=("parallel",),
                vmem_limit_bytes=vmem_limit),
        )(x3, bpool, w2, sel)

        # drop batch padding and the zero part-padding columns -> torch view(bs, -1) order
        out = out.reshape(bs_pad, C, p_pad)[:bs, :, :p_eff]
        return out.reshape(bs, C * p_eff)


# ----------------------------------------------------------------------------
# pure NumPy reference of the original (un-fused) 3-stage pipeline, for checking
# ----------------------------------------------------------------------------
def _reference_forward(metric, images, ignore_head=False):
    bs = images.shape[0]
    x = np.asarray(images).astype(np.float64) / 255.0
    Hout, Wout, P = metric.height, metric.width, metric.num_parts
    a_h = _bilinear_matrix(Hout, x.shape[2])
    a_w = _bilinear_matrix(Wout, x.shape[3])
    resized = np.einsum('hi,bcij,wj->bchw', a_h, x, a_w)
    hp = Hout // P
    pooled = resized.reshape(bs, 3, P, hp, Wout).mean(axis=(3, 4))       # (bs, 3, P)
    feats = np.einsum('kc,bcp->bkp', metric.w_proj.astype(np.float64), pooled)
    sqrt_num = 6
    if ignore_head:
        feats = feats[:, :, 1:]
        sqrt_num = 5
    fnorm = np.sqrt((feats ** 2).sum(axis=1, keepdims=True)) * math.sqrt(sqrt_num)
    return (feats / fnorm).reshape(bs, -1).astype(np.float32)


if __name__ == "__main__":
    key = jax.random.PRNGKey(0)
    bs, H0, W0 = 2, 32, 16
    images = jax.random.randint(key, (bs, 3, H0, W0), 0, 256,
                                dtype=jnp.int32).astype(jnp.uint8)

    metric = PCBReIDMetricPallas(feat_dim=32, height=24, width=12, num_parts=6)

    feats = jax.block_until_ready(metric(images))
    assert feats.shape == (bs, 32 * 6), feats.shape
    # each of the 6 part vectors has L2 norm 1/sqrt(6) -> total squared norm ~ 1
    sq = np.asarray(jnp.sum(feats.astype(jnp.float32) ** 2, axis=1))
    assert np.allclose(sq, 1.0, atol=2e-2), sq
    np.testing.assert_allclose(np.asarray(feats), _reference_forward(metric, images),
                               rtol=3e-2, atol=3e-3)

    # ignore_head path: head drop folded into the composed matrices (no extra slice/kernel)
    feats_nh = jax.block_until_ready(metric(images, ignore_head=True))
    assert feats_nh.shape == (bs, 32 * 5), feats_nh.shape
    np.testing.assert_allclose(np.asarray(feats_nh),
                               _reference_forward(metric, images, ignore_head=True),
                               rtol=3e-2, atol=3e-3)

    print("KERNEL_OK")
</pallas_src>

<mosaic_0001>
module attributes {stable_mosaic.version = 11 : i64} {
  func.func @_pcb_fused_kernel(%arg0: i32, %arg1: memref<1x32x1536xi8, #tpu.memory_space<vmem>>, %arg2: memref<1536x24xbf16, #tpu.memory_space<vmem>>, %arg3: memref<24x256xf32, #tpu.memory_space<vmem>>, %arg4: memref<256x8xf32, #tpu.memory_space<vmem>>, %arg5: memref<1x32x256xf32, #tpu.memory_space<vmem>>) attributes {dimension_semantics = [#tpu.dimension_semantics<parallel>], iteration_bounds = array<i64: 1>, scalar_prefetch = 0 : i64, scratch_operands = 0 : i64, tpu.core_type = #tpu.core_type<tc>, window_params = [{transform_indices = @transform_0, window_bounds = array<i64: 1, 32, 1536>}, {pipeline_mode = #tpu.pipeline_mode<synchronous>, transform_indices = @transform_1, window_bounds = array<i64: 1536, 24>}, {pipeline_mode = #tpu.pipeline_mode<synchronous>, transform_indices = @transform_2, window_bounds = array<i64: 24, 256>}, {pipeline_mode = #tpu.pipeline_mode<synchronous>, transform_indices = @transform_3, window_bounds = array<i64: 256, 8>}, {transform_indices = @transform_4, window_bounds = array<i64: 1, 32, 256>}]} {
    %c0 = arith.constant 0 : index
    %c0_0 = arith.constant 0 : index
    %c0_1 = arith.constant 0 : index
    %0 = vector.load %arg1[%c0, %c0_0, %c0_1] : memref<1x32x1536xi8, #tpu.memory_space<vmem>>, vector<1x32x1536xi8>
    %1 = vector.shape_cast %0 : vector<1x32x1536xi8> to vector<32x1536xi8>
    %2 = arith.uitofp %1 : vector<32x1536xi8> to vector<32x1536xf32>
    %3 = arith.truncf %2 : vector<32x1536xf32> to vector<32x1536xbf16>
    %c0_2 = arith.constant 0 : index
    %c0_3 = arith.constant 0 : index
    %4 = vector.load %arg2[%c0_2, %c0_3] : memref<1536x24xbf16, #tpu.memory_space<vmem>>, vector<1536x24xbf16>
    %cst = arith.constant dense<0.000000e+00> : vector<32x24xf32>
    %5 = tpu.matmul %3, %4, %cst {dimension_numbers = #tpu.dot_dimension_numbers<[1], [0], [0], [1], [0, 0, 1, 1], [], []>} : vector<32x1536xbf16>, vector<1536x24xbf16>, vector<32x24xf32> -> vector<32x24xf32>
    %c0_4 = arith.constant 0 : index
    %c0_5 = arith.constant 0 : index
    %6 = vector.load %arg3[%c0_4, %c0_5] : memref<24x256xf32, #tpu.memory_space<vmem>>, vector<24x256xf32>
    %cst_6 = arith.constant dense<0.000000e+00> : vector<32x256xf32>
    %7 = tpu.matmul %5, %6, %cst_6 {dimension_numbers = #tpu.dot_dimension_numbers<[1], [0], [0], [1], [0, 0, 1, 1], [], []>} : vector<32x24xf32>, vector<24x256xf32>, vector<32x256xf32> -> vector<32x256xf32>
    %8 = arith.mulf %7, %7 : vector<32x256xf32>
    %c0_7 = arith.constant 0 : index
    %c0_8 = arith.constant 0 : index
    %9 = vector.load %arg4[%c0_7, %c0_8] : memref<256x8xf32, #tpu.memory_space<vmem>>, vector<256x8xf32>
    %cst_9 = arith.constant dense<0.000000e+00> : vector<32x8xf32>
    %10 = tpu.matmul %8, %9, %cst_9 {dimension_numbers = #tpu.dot_dimension_numbers<[1], [0], [0], [1], [0, 0, 1, 1], [], []>} : vector<32x256xf32>, vector<256x8xf32>, vector<32x8xf32> -> vector<32x8xf32>
    %cst_10 = arith.constant 6.000000e+00 : f32
    %11 = vector.broadcast %cst_10 : f32 to vector<32x8xf32>
    %12 = arith.mulf %10, %11 : vector<32x8xf32>
    %cst_11 = arith.constant 9.99999996E-13 : f32
    %13 = vector.broadcast %cst_11 : f32 to vector<32x8xf32>
    %14 = arith.addf %12, %13 : vector<32x8xf32>
    %15 = math.rsqrt %14 : vector<32x8xf32>
    %16 = tpu.concatenate %15, %15, %15, %15, %15, %15, %15, %15, %15, %15, %15, %15, %15, %15, %15, %15 in 1 : vector<32x8xf32>, vector<32x8xf32>, vector<32x8xf32>, vector<32x8xf32>, vector<32x8xf32>, vector<32x8xf32>, vector<32x8xf32>, vector<32x8xf32>, vector<32x8xf32>, vector<32x8xf32>, vector<32x8xf32>, vector<32x8xf32>, vector<32x8xf32>, vector<32x8xf32>, vector<32x8xf32>, vector<32x8xf32> -> vector<32x128xf32>
    %17 = tpu.concatenate %15, %15, %15, %15, %15, %15, %15, %15, %15, %15, %15, %15, %15, %15, %15, %15 in 1 : vector<32x8xf32>, vector<32x8xf32>, vector<32x8xf32>, vector<32x8xf32>, vector<32x8xf32>, vector<32x8xf32>, vector<32x8xf32>, vector<32x8xf32>, vector<32x8xf32>, vector<32x8xf32>, vector<32x8xf32>, vector<32x8xf32>, vector<32x8xf32>, vector<32x8xf32>, vector<32x8xf32>, vector<32x8xf32> -> vector<32x128xf32>
    %18 = tpu.concatenate %16, %17 in 1 : vector<32x128xf32>, vector<32x128xf32> -> vector<32x256xf32>
    %19 = arith.mulf %7, %18 : vector<32x256xf32>
    %c0_12 = arith.constant 0 : index
    %c0_13 = arith.constant 0 : index
    %c0_14 = arith.constant 0 : index
    %20 = vector.load %arg5[%c0_12, %c0_13, %c0_14] : memref<1x32x256xf32, #tpu.memory_space<vmem>>, vector<1x32x256xf32>
    %21 = vector.shape_cast %20 : vector<1x32x256xf32> to vector<32x256xf32>
    %22 = vector.shape_cast %19 : vector<32x256xf32> to vector<1x32x256xf32>
    tpu.vector_store %arg5[%c0_12, %c0_13, %c0_14], %22 {strides = array<i32>} : memref<1x32x256xf32, #tpu.memory_space<vmem>>, vector<1x32x256xf32>,
    return
  }
  func.func @transform_0(%arg0: i32) -> (i32, i32, i32) {
    %c0_i32 = arith.constant 0 : i32
    %c0_i32_0 = arith.constant 0 : i32
    %c0_i32_1 = arith.constant 0 : i32
    return %arg0, %c0_i32, %c0_i32_0 : i32, i32, i32
  }
  func.func @transform_1(%arg0: i32) -> (i32, i32) {
    %c0_i32 = arith.constant 0 : i32
    %c0_i32_0 = arith.constant 0 : i32
    %c0_i32_1 = arith.constant 0 : i32
    return %c0_i32, %c0_i32_0 : i32, i32
  }
  func.func @transform_2(%arg0: i32) -> (i32, i32) {
    %c0_i32 = arith.constant 0 : i32
    %c0_i32_0 = arith.constant 0 : i32
    %c0_i32_1 = arith.constant 0 : i32
    return %c0_i32, %c0_i32_0 : i32, i32
  }
  func.func @transform_3(%arg0: i32) -> (i32, i32) {
    %c0_i32 = arith.constant 0 : i32
    %c0_i32_0 = arith.constant 0 : i32
    %c0_i32_1 = arith.constant 0 : i32
    return %c0_i32, %c0_i32_0 : i32, i32
  }
  func.func @transform_4(%arg0: i32) -> (i32, i32, i32) {
    %c0_i32 = arith.constant 0 : i32
    %c0_i32_0 = arith.constant 0 : i32
    %c0_i32_1 = arith.constant 0 : i32
    return %arg0, %c0_i32, %c0_i32_0 : i32, i32, i32
  }
}

</mosaic_0001>

<llo_original>
// kernel: tpu_custom_call.1
$region0: #{tpu_custom_call.1}
  #allocation0 [shape = 'u32[]', space=smem, size = 0x4, offset = 0x4, fixed_abs, tag = 'smem constant byte address 0x4 - core index']
  #allocation1 [shape = 'u32[144,128]{1,0:T(1,128)}', space=vmem, size = 0x12000, scoped, tag = 'internal scratch']
  %s0 = inlined_call_operand.vmem [shape: u8[1,32,1536], index: 0, kind: input, shape index: {}]
  %s1 = inlined_call_operand.vmem [shape: bf16[1536,24], index: 1, kind: input, shape index: {}]
  %s2 = inlined_call_operand.vmem [shape: f32[24,256], index: 2, kind: input, shape index: {}]
  %s3 = inlined_call_operand.vmem [shape: f32[256,8], index: 3, kind: input, shape index: {}]
  %s4 = inlined_call_operand.hbm [shape: f32[1,32,256], index: 4, kind: output, shape index: {}]
  %s5 = sld [smem:[#allocation0]]
  $region26: #{tpu_custom_call.1} parent=0
    _
  %s7 = ssub.s32 1, %s5
  %s8 = scalar_select 0, %s7, %s5
  $region1: #{tpu_custom_call.1} parent=0
    #allocation2 [shape = 'u8[32768]{0}', space=vmem, size = 0x8000, scoped, tag = 'output window, operand 0, single buffered']
    #allocation3 [shape = 's32[1]{0}', space=sflag, size = 0x4, scoped, tag = 'scoped memory for tpu_custom_call.1']
    %9 = vsyncpa [#allocation3], 0
    // Predicated region
    $region2: #{tpu_custom_call.1} parent=1 // pred_check
      _
    $region3: #{tpu_custom_call.1} parent=1 // pred_check_branch
      %11 = sbr.rel (0) target = $region5
    $region4: #{tpu_custom_call.1} parent=1 // pred_region
      _
    $region5: #{tpu_custom_call.1} parent=1 // pred_fallthru
      _
    // Predicated region
    $region6: #{tpu_custom_call.1} parent=1 // pred_check
      _
    $region7: #{tpu_custom_call.1} parent=1 // pred_check_branch
      %13 = sbr.rel (0) target = $region9
    $region8: #{tpu_custom_call.1} parent=1 // pred_region
      _
    $region9: #{tpu_custom_call.1} parent=1 // pred_fallthru
      _
    // Predicated region
    $region10: #{tpu_custom_call.1} parent=1 // pred_check
      _
    $region11: #{tpu_custom_call.1} parent=1 // pred_check_branch
      %15 = sbr.rel (0) target = $region13
    $region12: #{tpu_custom_call.1} parent=1 // pred_region
      _
    $region13: #{tpu_custom_call.1} parent=1 // pred_fallthru
      _
    // Predicated region
    $region14: #{tpu_custom_call.1} parent=1 // pred_check
      _
    $region15: #{tpu_custom_call.1} parent=1 // pred_check_branch
      %17 = sbr.rel (0) target = $region17
    $region16: #{tpu_custom_call.1} parent=1 // pred_region
      _
    $region17: #{tpu_custom_call.1} parent=1 // pred_fallthru
      _
    %v19 = vld [vmem:[%s0] sm:$0xff]
    %v20 = vld [vmem:[%s0 + $0x8] sm:$0xff]
    %v21 = vld [vmem:[%s0 + $0x10] sm:$0xff]
    %v22 = vld [vmem:[%s0 + $0x18] sm:$0xff]
    %v23 = vld [vmem:[%s0 + $0x20] sm:$0xff]
    %v24 = vld [vmem:[%s0 + $0x28] sm:$0xff]
    %v25 = vld [vmem:[%s0 + $0x30] sm:$0xff]
    %v26 = vld [vmem:[%s0 + $0x38] sm:$0xff]
    %v27 = vld [vmem:[%s0 + $0x40] sm:$0xff]
    %v28 = vld [vmem:[%s0 + $0x48] sm:$0xff]
    %v29 = vld [vmem:[%s0 + $0x50] sm:$0xff]
    %v30 = vld [vmem:[%s0 + $0x58] sm:$0xff]
    %v31 = vunpack.c.l.u8.bf16 %v19
    %v32 = vunpack.c.l.u8.bf16 %v20
    %v33 = vunpack.c.l.u8.bf16 %v21
    %v34 = vunpack.c.l.u8.bf16 %v22
    %v35 = vunpack.c.l.u8.bf16 %v23
    %v36 = vunpack.c.l.u8.bf16 %v24
    %v37 = vunpack.c.l.u8.bf16 %v25
    %v38 = vunpack.c.l.u8.bf16 %v26
    %v39 = vunpack.c.l.u8.bf16 %v27
    %v40 = vunpack.c.l.u8.bf16 %v28
    %v41 = vunpack.c.l.u8.bf16 %v29
    %v42 = vunpack.c.l.u8.bf16 %v30
    %v43 = vunpack.c.h.u8.bf16 %v19
    %v44 = vunpack.c.h.u8.bf16 %v20
    %v45 = vunpack.c.h.u8.bf16 %v21
    %v46 = vunpack.c.h.u8.bf16 %v22
    %v47 = vunpack.c.h.u8.bf16 %v23
    %v48 = vunpack.c.h.u8.bf16 %v24
    %v49 = vunpack.c.h.u8.bf16 %v25
    %v50 = vunpack.c.h.u8.bf16 %v26
    %v51 = vunpack.c.h.u8.bf16 %v27
    %v52 = vunpack.c.h.u8.bf16 %v28
    %v53 = vunpack.c.h.u8.bf16 %v29
    %v54 = vunpack.c.h.u8.bf16 %v30
    %v55 = vld [vmem:[%s1] sm:$0xf]
    %v56 = vld [vmem:[%s1 + $0x4] sm:$0xf]
    %v57 = vld [vmem:[%s1 + $0x8] sm:$0xf]
    %v58 = vld [vmem:[%s1 + $0xc] sm:$0xf]
    %v59 = vld [vmem:[%s1 + $0x10] sm:$0xf]
    %v60 = vld [vmem:[%s1 + $0x14] sm:$0xf]
    %v61 = vld [vmem:[%s1 + $0x18] sm:$0xf]
    %v62 = vld [vmem:[%s1 + $0x1c] sm:$0xf]
    %v63 = vld [vmem:[%s1 + $0x20] sm:$0xf]
    %v64 = vld [vmem:[%s1 + $0x24] sm:$0xf]
    %v65 = vld [vmem:[%s1 + $0x28] sm:$0xf]
    %v66 = vld [vmem:[%s1 + $0x2c] sm:$0xf]
    %v67 = vld [vmem:[%s1 + $0x30] sm:$0xf]
    %v68 = vld [vmem:[%s1 + $0x34] sm:$0xf]
    %v69 = vld [vmem:[%s1 + $0x38] sm:$0xf]
    %v70 = vld [vmem:[%s1 + $0x3c] sm:$0xf]
    %v71 = vld [vmem:[%s1 + $0x40] sm:$0xf]
    %v72 = vld [vmem:[%s1 + $0x44] sm:$0xf]
    %v73 = vld [vmem:[%s1 + $0x48] sm:$0xf]
    %v74 = vld [vmem:[%s1 + $0x4c] sm:$0xf]
    %v75 = vld [vmem:[%s1 + $0x50] sm:$0xf]
    %v76 = vld [vmem:[%s1 + $0x54] sm:$0xf]
    %v77 = vld [vmem:[%s1 + $0x58] sm:$0xf]
    %v78 = vld [vmem:[%s1 + $0x5c] sm:$0xf]
    %v79 = vld [vmem:[%s1 + $0x60] sm:$0xf]
    %v80 = vld [vmem:[%s1 + $0x64] sm:$0xf]
    %v81 = vld [vmem:[%s1 + $0x68] sm:$0xf]
    %v82 = vld [vmem:[%s1 + $0x6c] sm:$0xf]
    %v83 = vld [vmem:[%s1 + $0x70] sm:$0xf]
    %v84 = vld [vmem:[%s1 + $0x74] sm:$0xf]
    %v85 = vld [vmem:[%s1 + $0x78] sm:$0xf]
    %v86 = vld [vmem:[%s1 + $0x7c] sm:$0xf]
    %v87 = vld [vmem:[%s1 + $0x80] sm:$0xf]
    %v88 = vld [vmem:[%s1 + $0x84] sm:$0xf]
    %v89 = vld [vmem:[%s1 + $0x88] sm:$0xf]
    %v90 = vld [vmem:[%s1 + $0x8c] sm:$0xf]
    %v91 = vld [vmem:[%s1 + $0x90] sm:$0xf]
    %v92 = vld [vmem:[%s1 + $0x94] sm:$0xf]
    %v93 = vld [vmem:[%s1 + $0x98] sm:$0xf]
    %v94 = vld [vmem:[%s1 + $0x9c] sm:$0xf]
    %v95 = vld [vmem:[%s1 + $0xa0] sm:$0xf]
    %v96 = vld [vmem:[%s1 + $0xa4] sm:$0xf]
    %v97 = vld [vmem:[%s1 + $0xa8] sm:$0xf]
    %v98 = vld [vmem:[%s1 + $0xac] sm:$0xf]
    %v99 = vld [vmem:[%s1 + $0xb0] sm:$0xf]
    %v100 = vld [vmem:[%s1 + $0xb4] sm:$0xf]
    %v101 = vld [vmem:[%s1 + $0xb8] sm:$0xf]
    %v102 = vld [vmem:[%s1 + $0xbc] sm:$0xf]
    %v103 = vld [vmem:[%s1 + $0xc0] sm:$0xf]
    %v104 = vld [vmem:[%s1 + $0xc4] sm:$0xf]
    %v105 = vld [vmem:[%s1 + $0xc8] sm:$0xf]
    %v106 = vld [vmem:[%s1 + $0xcc] sm:$0xf]
    %v107 = vld [vmem:[%s1 + $0xd0] sm:$0xf]
    %v108 = vld [vmem:[%s1 + $0xd4] sm:$0xf]
    %v109 = vld [vmem:[%s1 + $0xd8] sm:$0xf]
    %v110 = vld [vmem:[%s1 + $0xdc] sm:$0xf]
    %v111 = vld [vmem:[%s1 + $0xe0] sm:$0xf]
    %v112 = vld [vmem:[%s1 + $0xe4] sm:$0xf]
    %v113 = vld [vmem:[%s1 + $0xe8] sm:$0xf]
    %v114 = vld [vmem:[%s1 + $0xec] sm:$0xf]
    %v115 = vld [vmem:[%s1 + $0xf0] sm:$0xf]
    %v116 = vld [vmem:[%s1 + $0xf4] sm:$0xf]
    %v117 = vld [vmem:[%s1 + $0xf8] sm:$0xf]
    %v118 = vld [vmem:[%s1 + $0xfc] sm:$0xf]
    %v119 = vld [vmem:[%s1 + $0x100] sm:$0xf]
    %v120 = vld [vmem:[%s1 + $0x104] sm:$0xf]
    %v121 = vld [vmem:[%s1 + $0x108] sm:$0xf]
    %v122 = vld [vmem:[%s1 + $0x10c] sm:$0xf]
    %v123 = vld [vmem:[%s1 + $0x110] sm:$0xf]
    %v124 = vld [vmem:[%s1 + $0x114] sm:$0xf]
    %v125 = vld [vmem:[%s1 + $0x118] sm:$0xf]
    %v126 = vld [vmem:[%s1 + $0x11c] sm:$0xf]
    %v127 = vld [vmem:[%s1 + $0x120] sm:$0xf]
    %v128 = vld [vmem:[%s1 + $0x124] sm:$0xf]
    %v129 = vld [vmem:[%s1 + $0x128] sm:$0xf]
    %v130 = vld [vmem:[%s1 + $0x12c] sm:$0xf]
    %v131 = vld [vmem:[%s1 + $0x130] sm:$0xf]
    %v132 = vld [vmem:[%s1 + $0x134] sm:$0xf]
    %v133 = vld [vmem:[%s1 + $0x138] sm:$0xf]
    %v134 = vld [vmem:[%s1 + $0x13c] sm:$0xf]
    %v135 = vld [vmem:[%s1 + $0x140] sm:$0xf]
    %v136 = vld [vmem:[%s1 + $0x144] sm:$0xf]
    %v137 = vld [vmem:[%s1 + $0x148] sm:$0xf]
    %v138 = vld [vmem:[%s1 + $0x14c] sm:$0xf]
    %v139 = vld [vmem:[%s1 + $0x150] sm:$0xf]
    %v140 = vld [vmem:[%s1 + $0x154] sm:$0xf]
    %v141 = vld [vmem:[%s1 + $0x158] sm:$0xf]
    %v142 = vld [vmem:[%s1 + $0x15c] sm:$0xf]
    %v143 = vld [vmem:[%s1 + $0x160] sm:$0xf]
    %v144 = vld [vmem:[%s1 + $0x164] sm:$0xf]
    %v145 = vld [vmem:[%s1 + $0x168] sm:$0xf]
    %v146 = vld [vmem:[%s1 + $0x16c] sm:$0xf]
    %v147 = vld [vmem:[%s1 + $0x170] sm:$0xf]
    %v148 = vld [vmem:[%s1 + $0x174] sm:$0xf]
    %v149 = vld [vmem:[%s1 + $0x178] sm:$0xf]
    %v150 = vld [vmem:[%s1 + $0x17c] sm:$0xf]
    %v151 = vld [vmem:[%s1 + $0x180] sm:$0xf]
    %v152 = vld [vmem:[%s1 + $0x184] sm:$0xf]
    %v153 = vld [vmem:[%s1 + $0x188] sm:$0xf]
    %v154 = vld [vmem:[%s1 + $0x18c] sm:$0xf]
    %v155 = vld [vmem:[%s1 + $0x190] sm:$0xf]
    %v156 = vld [vmem:[%s1 + $0x194] sm:$0xf]
    %v157 = vld [vmem:[%s1 + $0x198] sm:$0xf]
    %v158 = vld [vmem:[%s1 + $0x19c] sm:$0xf]
    %v159 = vld [vmem:[%s1 + $0x1a0] sm:$0xf]
    %v160 = vld [vmem:[%s1 + $0x1a4] sm:$0xf]
    %v161 = vld [vmem:[%s1 + $0x1a8] sm:$0xf]
    %v162 = vld [vmem:[%s1 + $0x1ac] sm:$0xf]
    %v163 = vld [vmem:[%s1 + $0x1b0] sm:$0xf]
    %v164 = vld [vmem:[%s1 + $0x1b4] sm:$0xf]
    %v165 = vld [vmem:[%s1 + $0x1b8] sm:$0xf]
    %v166 = vld [vmem:[%s1 + $0x1bc] sm:$0xf]
    %v167 = vld [vmem:[%s1 + $0x1c0] sm:$0xf]
    %v168 = vld [vmem:[%s1 + $0x1c4] sm:$0xf]
    %v169 = vld [vmem:[%s1 + $0x1c8] sm:$0xf]
    %v170 = vld [vmem:[%s1 + $0x1cc] sm:$0xf]
    %v171 = vld [vmem:[%s1 + $0x1d0] sm:$0xf]
    %v172 = vld [vmem:[%s1 + $0x1d4] sm:$0xf]
    %v173 = vld [vmem:[%s1 + $0x1d8] sm:$0xf]
    %v174 = vld [vmem:[%s1 + $0x1dc] sm:$0xf]
    %v175 = vld [vmem:[%s1 + $0x1e0] sm:$0xf]
    %v176 = vld [vmem:[%s1 + $0x1e4] sm:$0xf]
    %v177 = vld [vmem:[%s1 + $0x1e8] sm:$0xf]
    %v178 = vld [vmem:[%s1 + $0x1ec] sm:$0xf]
    %v179 = vld [vmem:[%s1 + $0x1f0] sm:$0xf]
    %v180 = vld [vmem:[%s1 + $0x1f4] sm:$0xf]
    %v181 = vld [vmem:[%s1 + $0x1f8] sm:$0xf]
    %v182 = vld [vmem:[%s1 + $0x1fc] sm:$0xf]
    %v183 = vld [vmem:[%s1 + $0x200] sm:$0xf]
    %v184 = vld [vmem:[%s1 + $0x204] sm:$0xf]
    %v185 = vld [vmem:[%s1 + $0x208] sm:$0xf]
    %v186 = vld [vmem:[%s1 + $0x20c] sm:$0xf]
    %v187 = vld [vmem:[%s1 + $0x210] sm:$0xf]
    %v188 = vld [vmem:[%s1 + $0x214] sm:$0xf]
    %v189 = vld [vmem:[%s1 + $0x218] sm:$0xf]
    %v190 = vld [vmem:[%s1 + $0x21c] sm:$0xf]
    %v191 = vld [vmem:[%s1 + $0x220] sm:$0xf]
    %v192 = vld [vmem:[%s1 + $0x224] sm:$0xf]
    %v193 = vld [vmem:[%s1 + $0x228] sm:$0xf]
    %v194 = vld [vmem:[%s1 + $0x22c] sm:$0xf]
    %v195 = vld [vmem:[%s1 + $0x230] sm:$0xf]
    %v196 = vld [vmem:[%s1 + $0x234] sm:$0xf]
    %v197 = vld [vmem:[%s1 + $0x238] sm:$0xf]
    %v198 = vld [vmem:[%s1 + $0x23c] sm:$0xf]
    %v199 = vld [vmem:[%s1 + $0x240] sm:$0xf]
    %v200 = vld [vmem:[%s1 + $0x244] sm:$0xf]
    %v201 = vld [vmem:[%s1 + $0x248] sm:$0xf]
    %v202 = vld [vmem:[%s1 + $0x24c] sm:$0xf]
    %v203 = vld [vmem:[%s1 + $0x250] sm:$0xf]
    %v204 = vld [vmem:[%s1 + $0x254] sm:$0xf]
    %v205 = vld [vmem:[%s1 + $0x258] sm:$0xf]
    %v206 = vld [vmem:[%s1 + $0x25c] sm:$0xf]
    %v207 = vld [vmem:[%s1 + $0x260] sm:$0xf]
    %v208 = vld [vmem:[%s1 + $0x264] sm:$0xf]
    %v209 = vld [vmem:[%s1 + $0x268] sm:$0xf]
    %v210 = vld [vmem:[%s1 + $0x26c] sm:$0xf]
    %v211 = vld [vmem:[%s1 + $0x270] sm:$0xf]
    %v212 = vld [vmem:[%s1 + $0x274] sm:$0xf]
    %v213 = vld [vmem:[%s1 + $0x278] sm:$0xf]
    %v214 = vld [vmem:[%s1 + $0x27c] sm:$0xf]
    %v215 = vld [vmem:[%s1 + $0x280] sm:$0xf]
    %v216 = vld [vmem:[%s1 + $0x284] sm:$0xf]
    %v217 = vld [vmem:[%s1 + $0x288] sm:$0xf]
    %v218 = vld [vmem:[%s1 + $0x28c] sm:$0xf]
    %v219 = vld [vmem:[%s1 + $0x290] sm:$0xf]
    %v220 = vld [vmem:[%s1 + $0x294] sm:$0xf]
    %v221 = vld [vmem:[%s1 + $0x298] sm:$0xf]
    %v222 = vld [vmem:[%s1 + $0x29c] sm:$0xf]
    %v223 = vld [vmem:[%s1 + $0x2a0] sm:$0xf]
    %v224 = vld [vmem:[%s1 + $0x2a4] sm:$0xf]
    %v225 = vld [vmem:[%s1 + $0x2a8] sm:$0xf]
    %v226 = vld [vmem:[%s1 + $0x2ac] sm:$0xf]
    %v227 = vld [vmem:[%s1 + $0x2b0] sm:$0xf]
    %v228 = vld [vmem:[%s1 + $0x2b4] sm:$0xf]
    %v229 = vld [vmem:[%s1 + $0x2b8] sm:$0xf]
    %v230 = vld [vmem:[%s1 + $0x2bc] sm:$0xf]
    %v231 = vld [vmem:[%s1 + $0x2c0] sm:$0xf]
    %v232 = vld [vmem:[%s1 + $0x2c4] sm:$0xf]
    %v233 = vld [vmem:[%s1 + $0x2c8] sm:$0xf]
    %v234 = vld [vmem:[%s1 + $0x2cc] sm:$0xf]
    %v235 = vld [vmem:[%s1 + $0x2d0] sm:$0xf]
    %v236 = vld [vmem:[%s1 + $0x2d4] sm:$0xf]
    %v237 = vld [vmem:[%s1 + $0x2d8] sm:$0xf]
    %v238 = vld [vmem:[%s1 + $0x2dc] sm:$0xf]
    %v239 = vld [vmem:[%s1 + $0x2e0] sm:$0xf]
    %v240 = vld [vmem:[%s1 + $0x2e4] sm:$0xf]
    %v241 = vld [vmem:[%s1 + $0x2e8] sm:$0xf]
    %v242 = vld [vmem:[%s1 + $0x2ec] sm:$0xf]
    %v243 = vld [vmem:[%s1 + $0x2f0] sm:$0xf]
    %v244 = vld [vmem:[%s1 + $0x2f4] sm:$0xf]
    %v245 = vld [vmem:[%s1 + $0x2f8] sm:$0xf]
    %v246 = vld [vmem:[%s1 + $0x2fc] sm:$0xf]
    %v439 = vunpack.c.l.b16 %v55
    %v440 = vunpack.c.l.b16 %v56
    %v441 = vunpack.c.l.b16 %v57
    %v442 = vunpack.c.l.b16 %v58
    %v443 = vunpack.c.l.b16 %v59
    %v444 = vunpack.c.l.b16 %v60
    %v445 = vunpack.c.l.b16 %v61
    %v446 = vunpack.c.l.b16 %v62
    %v447 = vunpack.c.l.b16 %v63
    %v448 = vunpack.c.l.b16 %v64
    %v449 = vunpack.c.l.b16 %v65
    %v450 = vunpack.c.l.b16 %v66
    %v451 = vunpack.c.l.b16 %v67
    %v452 = vunpack.c.l.b16 %v68
    %v453 = vunpack.c.l.b16 %v69
    %v454 = vunpack.c.l.b16 %v70
    %v455 = vunpack.c.l.b16 %v71
    %v456 = vunpack.c.l.b16 %v72
    %v457 = vunpack.c.l.b16 %v73
    %v458 = vunpack.c.l.b16 %v74
    %v459 = vunpack.c.l.b16 %v75
    %v460 = vunpack.c.l.b16 %v76
    %v461 = vunpack.c.l.b16 %v77
    %v462 = vunpack.c.l.b16 %v78
    %v463 = vunpack.c.l.b16 %v79
    %v464 = vunpack.c.l.b16 %v80
    %v465 = vunpack.c.l.b16 %v81
    %v466 = vunpack.c.l.b16 %v82
    %v467 = vunpack.c.l.b16 %v83
    %v468 = vunpack.c.l.b16 %v84
    %v469 = vunpack.c.l.b16 %v85
    %v470 = vunpack.c.l.b16 %v86
    %v471 = vunpack.c.l.b16 %v87
    %v472 = vunpack.c.l.b16 %v88
    %v473 = vunpack.c.l.b16 %v89
    %v474 = vunpack.c.l.b16 %v90
    %v475 = vunpack.c.l.b16 %v91
    %v476 = vunpack.c.l.b16 %v92
    %v477 = vunpack.c.l.b16 %v93
    %v478 = vunpack.c.l.b16 %v94
    %v479 = vunpack.c.l.b16 %v95
    %v480 = vunpack.c.l.b16 %v96
    %v481 = vunpack.c.l.b16 %v97
    %v482 = vunpack.c.l.b16 %v98
    %v483 = vunpack.c.l.b16 %v99
    %v484 = vunpack.c.l.b16 %v100
    %v485 = vunpack.c.l.b16 %v101
    %v486 = vunpack.c.l.b16 %v102
    %v487 = vunpack.c.l.b16 %v103
    %v488 = vunpack.c.l.b16 %v104
    %v489 = vunpack.c.l.b16 %v105
    %v490 = vunpack.c.l.b16 %v106
    %v491 = vunpack.c.l.b16 %v107
    %v492 = vunpack.c.l.b16 %v108
    %v493 = vunpack.c.l.b16 %v109
    %v494 = vunpack.c.l.b16 %v110
    %v495 = vunpack.c.l.b16 %v111
    %v496 = vunpack.c.l.b16 %v112
    %v497 = vunpack.c.l.b16 %v113
    %v498 = vunpack.c.l.b16 %v114
    %v499 = vunpack.c.l.b16 %v115
    %v500 = vunpack.c.l.b16 %v116
    %v501 = vunpack.c.l.b16 %v117
    %v502 = vunpack.c.l.b16 %v118
    %v503 = vunpack.c.l.b16 %v119
    %v504 = vunpack.c.l.b16 %v120
    %v505 = vunpack.c.l.b16 %v121
    %v506 = vunpack.c.l.b16 %v122
    %v507 = vunpack.c.l.b16 %v123
    %v508 = vunpack.c.l.b16 %v124
    %v509 = vunpack.c.l.b16 %v125
    %v510 = vunpack.c.l.b16 %v126
    %v511 = vunpack.c.l.b16 %v127
    %v512 = vunpack.c.l.b16 %v128
    %v513 = vunpack.c.l.b16 %v129
    %v514 = vunpack.c.l.b16 %v130
    %v515 = vunpack.c.l.b16 %v131
    %v516 = vunpack.c.l.b16 %v132
    %v517 = vunpack.c.l.b16 %v133
    %v518 = vunpack.c.l.b16 %v134
    %v519 = vunpack.c.l.b16 %v135
    %v520 = vunpack.c.l.b16 %v136
    %v521 = vunpack.c.l.b16 %v137
    %v522 = vunpack.c.l.b16 %v138
    %v523 = vunpack.c.l.b16 %v139
    %v524 = vunpack.c.l.b16 %v140
    %v525 = vunpack.c.l.b16 %v141
    %v526 = vunpack.c.l.b16 %v142
    %v527 = vunpack.c.l.b16 %v143
    %v528 = vunpack.c.l.b16 %v144
    %v529 = vunpack.c.l.b16 %v145
    %v530 = vunpack.c.l.b16 %v146
    %v531 = vunpack.c.l.b16 %v147
    %v532 = vunpack.c.l.b16 %v148
    %v533 = vunpack.c.l.b16 %v149
    %v534 = vunpack.c.l.b16 %v150
    %v535 = vunpack.c.l.b16 %v151
    %v536 = vunpack.c.l.b16 %v152
    %v537 = vunpack.c.l.b16 %v153
    %v538 = vunpack.c.l.b16 %v154
    %v539 = vunpack.c.l.b16 %v155
    %v540 = vunpack.c.l.b16 %v156
    %v541 = vunpack.c.l.b16 %v157
    %v542 = vunpack.c.l.b16 %v158
    %v543 = vunpack.c.l.b16 %v159
    %v544 = vunpack.c.l.b16 %v160
    %v545 = vunpack.c.l.b16 %v161
    %v546 = vunpack.c.l.b16 %v162
    %v547 = vunpack.c.l.b16 %v163
    %v548 = vunpack.c.l.b16 %v164
    %v549 = vunpack.c.l.b16 %v165
    %v550 = vunpack.c.l.b16 %v166
    %v551 = vunpack.c.l.b16 %v167
    %v552 = vunpack.c.l.b16 %v168
    %v553 = vunpack.c.l.b16 %v169
    %v554 = vunpack.c.l.b16 %v170
    %v555 = vunpack.c.l.b16 %v171
    %v556 = vunpack.c.l.b16 %v172
    %v557 = vunpack.c.l.b16 %v173
    %v558 = vunpack.c.l.b16 %v174
    %v559 = vunpack.c.l.b16 %v175
    %v560 = vunpack.c.l.b16 %v176
    %v561 = vunpack.c.l.b16 %v177
    %v562 = vunpack.c.l.b16 %v178
    %v563 = vunpack.c.l.b16 %v179
    %v564 = vunpack.c.l.b16 %v180
    %v565 = vunpack.c.l.b16 %v181
    %v566 = vunpack.c.l.b16 %v182
    %v567 = vunpack.c.l.b16 %v183
    %v568 = vunpack.c.l.b16 %v184
    %v569 = vunpack.c.l.b16 %v185
    %v570 = vunpack.c.l.b16 %v186
    %v571 = vunpack.c.l.b16 %v187
    %v572 = vunpack.c.l.b16 %v188
    %v573 = vunpack.c.l.b16 %v189
    %v574 = vunpack.c.l.b16 %v190
    %v575 = vunpack.c.l.b16 %v191
    %v576 = vunpack.c.l.b16 %v192
    %v577 = vunpack.c.l.b16 %v193
    %v578 = vunpack.c.l.b16 %v194
    %v579 = vunpack.c.l.b16 %v195
    %v580 = vunpack.c.l.b16 %v196
    %v581 = vunpack.c.l.b16 %v197
    %v582 = vunpack.c.l.b16 %v198
    %v583 = vunpack.c.l.b16 %v199
    %v584 = vunpack.c.l.b16 %v200
    %v585 = vunpack.c.l.b16 %v201
    %v586 = vunpack.c.l.b16 %v202
    %v587 = vunpack.c.l.b16 %v203
    %v588 = vunpack.c.l.b16 %v204
    %v589 = vunpack.c.l.b16 %v205
    %v590 = vunpack.c.l.b16 %v206
    %v591 = vunpack.c.l.b16 %v207
    %v592 = vunpack.c.l.b16 %v208
    %v593 = vunpack.c.l.b16 %v209
    %v594 = vunpack.c.l.b16 %v210
    %v595 = vunpack.c.l.b16 %v211
    %v596 = vunpack.c.l.b16 %v212
    %v597 = vunpack.c.l.b16 %v213
    %v598 = vunpack.c.l.b16 %v214
    %v599 = vunpack.c.l.b16 %v215
    %v600 = vunpack.c.l.b16 %v216
    %v601 = vunpack.c.l.b16 %v217
    %v602 = vunpack.c.l.b16 %v218
    %v603 = vunpack.c.l.b16 %v219
    %v604 = vunpack.c.l.b16 %v220
    %v605 = vunpack.c.l.b16 %v221
    %v606 = vunpack.c.l.b16 %v222
    %v607 = vunpack.c.l.b16 %v223
    %v608 = vunpack.c.l.b16 %v224
    %v609 = vunpack.c.l.b16 %v225
    %v610 = vunpack.c.l.b16 %v226
    %v611 = vunpack.c.l.b16 %v227
    %v612 = vunpack.c.l.b16 %v228
    %v613 = vunpack.c.l.b16 %v229
    %v614 = vunpack.c.l.b16 %v230
    %v615 = vunpack.c.l.b16 %v231
    %v616 = vunpack.c.l.b16 %v232
    %v617 = vunpack.c.l.b16 %v233
    %v618 = vunpack.c.l.b16 %v234
    %v619 = vunpack.c.l.b16 %v235
    %v620 = vunpack.c.l.b16 %v236
    %v621 = vunpack.c.l.b16 %v237
    %v622 = vunpack.c.l.b16 %v238
    %v623 = vunpack.c.l.b16 %v239
    %v624 = vunpack.c.l.b16 %v240
    %v625 = vunpack.c.l.b16 %v241
    %v626 = vunpack.c.l.b16 %v242
    %v627 = vunpack.c.l.b16 %v243
    %v628 = vunpack.c.l.b16 %v244
    %v629 = vunpack.c.l.b16 %v245
    %v630 = vunpack.c.l.b16 %v246
    %v631 = vpack.c.b16 %v440, %v439
    %v632 = vpack.c.b16 %v442, %v441
    %v633 = vpack.c.b16 %v444, %v443
    %v634 = vpack.c.b16 %v446, %v445
    %v635 = vpack.c.b16 %v448, %v447
    %v636 = vpack.c.b16 %v450, %v449
    %v637 = vpack.c.b16 %v452, %v451
    %v638 = vpack.c.b16 %v454, %v453
    %v639 = vpack.c.b16 %v456, %v455
    %v640 = vpack.c.b16 %v458, %v457
    %v641 = vpack.c.b16 %v460, %v459
    %v642 = vpack.c.b16 %v462, %v461
    %v643 = vpack.c.b16 %v464, %v463
    %v644 = vpack.c.b16 %v466, %v465
    %v645 = vpack.c.b16 %v468, %v467
    %v646 = vpack.c.b16 %v470, %v469
    %v647 = vpack.c.b16 %v472, %v471
    %v648 = vpack.c.b16 %v474, %v473
    %v649 = vpack.c.b16 %v476, %v475
    %v650 = vpack.c.b16 %v478, %v477
    %v651 = vpack.c.b16 %v480, %v479
    %v652 = vpack.c.b16 %v482, %v481
    %v653 = vpack.c.b16 %v484, %v483
    %v654 = vpack.c.b16 %v486, %v485
    %v655 = vpack.c.b16 %v488, %v487
    %v656 = vpack.c.b16 %v490, %v489
    %v657 = vpack.c.b16 %v492, %v491
    %v658 = vpack.c.b16 %v494, %v493
    %v659 = vpack.c.b16 %v496, %v495
    %v660 = vpack.c.b16 %v498, %v497
    %v661 = vpack.c.b16 %v500, %v499
    %v662 = vpack.c.b16 %v502, %v501
    %v663 = vpack.c.b16 %v504, %v503
    %v664 = vpack.c.b16 %v506, %v505
    %v665 = vpack.c.b16 %v508, %v507
    %v666 = vpack.c.b16 %v510, %v509
    %v667 = vpack.c.b16 %v512, %v511
    %v668 = vpack.c.b16 %v514, %v513
    %v669 = vpack.c.b16 %v516, %v515
    %v670 = vpack.c.b16 %v518, %v517
    %v671 = vpack.c.b16 %v520, %v519
    %v672 = vpack.c.b16 %v522, %v521
    %v673 = vpack.c.b16 %v524, %v523
    %v674 = vpack.c.b16 %v526, %v525
    %v675 = vpack.c.b16 %v528, %v527
    %v676 = vpack.c.b16 %v530, %v529
    %v677 = vpack.c.b16 %v532, %v531
    %v678 = vpack.c.b16 %v534, %v533
    %v679 = vpack.c.b16 %v536, %v535
    %v680 = vpack.c.b16 %v538, %v537
    %v681 = vpack.c.b16 %v540, %v539
    %v682 = vpack.c.b16 %v542, %v541
    %v683 = vpack.c.b16 %v544, %v543
    %v684 = vpack.c.b16 %v546, %v545
    %v685 = vpack.c.b16 %v548, %v547
    %v686 = vpack.c.b16 %v550, %v549
    %v687 = vpack.c.b16 %v552, %v551
    %v688 = vpack.c.b16 %v554, %v553
    %v689 = vpack.c.b16 %v556, %v555
    %v690 = vpack.c.b16 %v558, %v557
    %v691 = vpack.c.b16 %v560, %v559
    %v692 = vpack.c.b16 %v562, %v561
    %v693 = vpack.c.b16 %v564, %v563
    %v694 = vpack.c.b16 %v566, %v565
    %v695 = vpack.c.b16 %v568, %v567
    %v696 = vpack.c.b16 %v570, %v569
    %v697 = vpack.c.b16 %v572, %v571
    %v698 = vpack.c.b16 %v574, %v573
    %v699 = vpack.c.b16 %v576, %v575
    %v700 = vpack.c.b16 %v578, %v577
    %v701 = vpack.c.b16 %v580, %v579
    %v702 = vpack.c.b16 %v582, %v581
    %v703 = vpack.c.b16 %v584, %v583
    %v704 = vpack.c.b16 %v586, %v585
    %v705 = vpack.c.b16 %v588, %v587
    %v706 = vpack.c.b16 %v590, %v589
    %v707 = vpack.c.b16 %v592, %v591
    %v708 = vpack.c.b16 %v594, %v593
    %v709 = vpack.c.b16 %v596, %v595
    %v710 = vpack.c.b16 %v598, %v597
    %v711 = vpack.c.b16 %v600, %v599
    %v712 = vpack.c.b16 %v602, %v601
    %v713 = vpack.c.b16 %v604, %v603
    %v714 = vpack.c.b16 %v606, %v605
    %v715 = vpack.c.b16 %v608, %v607
    %v716 = vpack.c.b16 %v610, %v609
    %v717 = vpack.c.b16 %v612, %v611
    %v718 = vpack.c.b16 %v614, %v613
    %v719 = vpack.c.b16 %v616, %v615
    %v720 = vpack.c.b16 %v618, %v617
    %v721 = vpack.c.b16 %v620, %v619
    %v722 = vpack.c.b16 %v622, %v621
    %v723 = vpack.c.b16 %v624, %v623
    %v724 = vpack.c.b16 %v626, %v625
    %v725 = vpack.c.b16 %v628, %v627
    %v726 = vpack.c.b16 %v630, %v629
    %823 = vmatprep.subr.bf16.mxu0 0
    %824 = vmatpush1.bf16.msra.mxu0 %v631
    %825 = vmatprep.subr.bf16.mxu0 0
    %826 = vmatpush1.bf16.msra.mxu0 %v632
    %827 = vmatprep.subr.bf16.mxu0 0
    %828 = vmatpush1.bf16.msra.mxu0 %v633
    %829 = vmatprep.subr.bf16.mxu0 0
    %830 = vmatpush1.bf16.msra.mxu0 %v634
    %831 = vmatprep.subr.bf16.mxu0 0
    %832 = vmatpush1.bf16.msra.mxu0 %v635
    %833 = vmatprep.subr.bf16.mxu0 0
    %834 = vmatpush1.bf16.msra.mxu0 %v636
    %835 = vmatprep.subr.bf16.mxu0 0
    %836 = vmatpush1.bf16.msra.mxu0 %v637
    %837 = vmatprep.subr.bf16.mxu0 0
    %838 = vmatpush1.bf16.msra.mxu0 %v638
    %839 = vmatprep.subr.bf16.mxu0 0
    %840 = vmatpush1.bf16.msra.mxu0 %v639
    %841 = vmatprep.subr.bf16.mxu0 0
    %842 = vmatpush1.bf16.msra.mxu0 %v640
    %843 = vmatprep.subr.bf16.mxu0 0
    %844 = vmatpush1.bf16.msra.mxu0 %v641
    %845 = vmatprep.subr.bf16.mxu0 0
    %846 = vmatpush1.bf16.msra.mxu0 %v642
    %847 = vmatprep.subr.bf16.mxu0 0
    %848 = vmatpush1.bf16.msra.mxu0 %v643
    %849 = vmatprep.subr.bf16.mxu0 0
    %850 = vmatpush1.bf16.msra.mxu0 %v644
    %851 = vmatprep.subr.bf16.mxu0 0
    %852 = vmatpush1.bf16.msra.mxu0 %v645
    %853 = vmatprep.subr.bf16.mxu0 0
    %854 = vmatpush1.bf16.msra.mxu0 %v646
    %855 = vmatprep.mubr.bf16.mxu0 %v32
    %856 = vmatmul.mubr.bf16.gmra.mrb[0].mxu0 %v31
    %v857 = vpop.f32.mrb[0].mxu0
    %v858 = vadd.f32 0.0, %v857
    %v859 = vpop.f32.mrb[0].mxu0
    %v860 = vpop.f32.mrb[0].mxu0
    %v861 = vadd.f32 0.0, %v860
    %v862 = vpop.f32.mrb[0].mxu0
    %863 = vmatprep.mubr.bf16.mxu0 %v44
    %864 = vmatmul.mubr.bf16.gmra.mrb[0].mxu0 %v43
    %v865 = vpop.f32.mrb[0].mxu0
    %v866 = vadd.f32 0.0, %v865
    %v867 = vpop.f32.mrb[0].mxu0
    %v868 = vpop.f32.mrb[0].mxu0
    %v869 = vadd.f32 0.0, %v868
    %v870 = vpop.f32.mrb[0].mxu0
    %871 = vdwg.mxu0
    %872 = vmatprep.subr.bf16.mxu0 0
    %873 = vmatpush1.bf16.msra.mxu0 %v647
    %874 = vmatprep.subr.bf16.mxu0 0
    %875 = vmatpush1.bf16.msra.mxu0 %v648
    %876 = vmatprep.subr.bf16.mxu0 0
    %877 = vmatpush1.bf16.msra.mxu0 %v649
    %878 = vmatprep.subr.bf16.mxu0 0
    %879 = vmatpush1.bf16.msra.mxu0 %v650
    %880 = vmatprep.subr.bf16.mxu0 0
    %881 = vmatpush1.bf16.msra.mxu0 %v651
    %882 = vmatprep.subr.bf16.mxu0 0
    %883 = vmatpush1.bf16.msra.mxu0 %v652
    %884 = vmatprep.subr.bf16.mxu0 0
    %885 = vmatpush1.bf16.msra.mxu0 %v653
    %886 = vmatprep.subr.bf16.mxu0 0
    %887 = vmatpush1.bf16.msra.mxu0 %v654
    %888 = vmatprep.subr.bf16.mxu0 0
    %889 = vmatpush1.bf16.msra.mxu0 %v655
    %890 = vmatprep.subr.bf16.mxu0 0
    %891 = vmatpush1.bf16.msra.mxu0 %v656
    %892 = vmatprep.subr.bf16.mxu0 0
    %893 = vmatpush1.bf16.msra.mxu0 %v657
    %894 = vmatprep.subr.bf16.mxu0 0
    %895 = vmatpush1.bf16.msra.mxu0 %v658
    %896 = vmatprep.subr.bf16.mxu0 0
    %897 = vmatpush1.bf16.msra.mxu0 %v659
    %898 = vmatprep.subr.bf16.mxu0 0
    %899 = vmatpush1.bf16.msra.mxu0 %v660
    %900 = vmatprep.subr.bf16.mxu0 0
    %901 = vmatpush1.bf16.msra.mxu0 %v661
    %902 = vmatprep.subr.bf16.mxu0 0
    %903 = vmatpush1.bf16.msra.mxu0 %v662
    %904 = vmatprep.mubr.bf16.mxu0 %v34
    %905 = vmatmul.mubr.bf16.gmra.mrb[0].mxu0 %v33
    %v906 = vpop.f32.mrb[0].mxu0
    %v907 = vadd.f32 %v858, %v906
    %v908 = vpop.f32.mrb[0].mxu0
    %v909 = vpop.f32.mrb[0].mxu0
    %v910 = vadd.f32 %v861, %v909
    %v911 = vpop.f32.mrb[0].mxu0
    %912 = vmatprep.mubr.bf16.mxu0 %v46
    %913 = vmatmul.mubr.bf16.gmra.mrb[0].mxu0 %v45
    %v914 = vpop.f32.mrb[0].mxu0
    %v915 = vadd.f32 %v866, %v914
    %v916 = vpop.f32.mrb[0].mxu0
    %v917 = vpop.f32.mrb[0].mxu0
    %v918 = vadd.f32 %v869, %v917
    %v919 = vpop.f32.mrb[0].mxu0
    %920 = vdwg.mxu0
    %921 = vmatprep.subr.bf16.mxu0 0
    %922 = vmatpush1.bf16.msra.mxu0 %v663
    %923 = vmatprep.subr.bf16.mxu0 0
    %924 = vmatpush1.bf16.msra.mxu0 %v664
    %925 = vmatprep.subr.bf16.mxu0 0
    %926 = vmatpush1.bf16.msra.mxu0 %v665
    %927 = vmatprep.subr.bf16.mxu0 0
    %928 = vmatpush1.bf16.msra.mxu0 %v666
    %929 = vmatprep.subr.bf16.mxu0 0
    %930 = vmatpush1.bf16.msra.mxu0 %v667
    %931 = vmatprep.subr.bf16.mxu0 0
    %932 = vmatpush1.bf16.msra.mxu0 %v668
    %933 = vmatprep.subr.bf16.mxu0 0
    %934 = vmatpush1.bf16.msra.mxu0 %v669
    %935 = vmatprep.subr.bf16.mxu0 0
    %936 = vmatpush1.bf16.msra.mxu0 %v670
    %937 = vmatprep.subr.bf16.mxu0 0
    %938 = vmatpush1.bf16.msra.mxu0 %v671
    %939 = vmatprep.subr.bf16.mxu0 0
    %940 = vmatpush1.bf16.msra.mxu0 %v672
    %941 = vmatprep.subr.bf16.mxu0 0
    %942 = vmatpush1.bf16.msra.mxu0 %v673
    %943 = vmatprep.subr.bf16.mxu0 0
    %944 = vmatpush1.bf16.msra.mxu0 %v674
    %945 = vmatprep.subr.bf16.mxu0 0
    %946 = vmatpush1.bf16.msra.mxu0 %v675
    %947 = vmatprep.subr.bf16.mxu0 0
    %948 = vmatpush1.bf16.msra.mxu0 %v676
    %949 = vmatprep.subr.bf16.mxu0 0
    %950 = vmatpush1.bf16.msra.mxu0 %v677
    %951 = vmatprep.subr.bf16.mxu0 0
    %952 = vmatpush1.bf16.msra.mxu0 %v678
    %953 = vmatprep.mubr.bf16.mxu0 %v36
    %954 = vmatmul.mubr.bf16.gmra.mrb[0].mxu0 %v35
    %v955 = vpop.f32.mrb[0].mxu0
    %v956 = vadd.f32 %v907, %v955
    %v957 = vpop.f32.mrb[0].mxu0
    %v958 = vpop.f32.mrb[0].mxu0
    %v959 = vadd.f32 %v910, %v958
    %v960 = vpop.f32.mrb[0].mxu0
    %961 = vmatprep.mubr.bf16.mxu0 %v48
    %962 = vmatmul.mubr.bf16.gmra.mrb[0].mxu0 %v47
    %v963 = vpop.f32.mrb[0].mxu0
    %v964 = vadd.f32 %v915, %v963
    %v965 = vpop.f32.mrb[0].mxu0
    %v966 = vpop.f32.mrb[0].mxu0
    %v967 = vadd.f32 %v918, %v966
    %v968 = vpop.f32.mrb[0].mxu0
    %969 = vdwg.mxu0
    %970 = vmatprep.subr.bf16.mxu0 0
    %971 = vmatpush1.bf16.msra.mxu0 %v679
    %972 = vmatprep.subr.bf16.mxu0 0
    %973 = vmatpush1.bf16.msra.mxu0 %v680
    %974 = vmatprep.subr.bf16.mxu0 0
    %975 = vmatpush1.bf16.msra.mxu0 %v681
    %976 = vmatprep.subr.bf16.mxu0 0
    %977 = vmatpush1.bf16.msra.mxu0 %v682
    %978 = vmatprep.subr.bf16.mxu0 0
    %979 = vmatpush1.bf16.msra.mxu0 %v683
    %980 = vmatprep.subr.bf16.mxu0 0
    %981 = vmatpush1.bf16.msra.mxu0 %v684
    %982 = vmatprep.subr.bf16.mxu0 0
    %983 = vmatpush1.bf16.msra.mxu0 %v685
    %984 = vmatprep.subr.bf16.mxu0 0
    %985 = vmatpush1.bf16.msra.mxu0 %v686
    %986 = vmatprep.subr.bf16.mxu0 0
    %987 = vmatpush1.bf16.msra.mxu0 %v687
    %988 = vmatprep.subr.bf16.mxu0 0
    %989 = vmatpush1.bf16.msra.mxu0 %v688
    %990 = vmatprep.subr.bf16.mxu0 0
    %991 = vmatpush1.bf16.msra.mxu0 %v689
    %992 = vmatprep.subr.bf16.mxu0 0
    %993 = vmatpush1.bf16.msra.mxu0 %v690
    %994 = vmatprep.subr.bf16.mxu0 0
    %995 = vmatpush1.bf16.msra.mxu0 %v691
    %996 = vmatprep.subr.bf16.mxu0 0
    %997 = vmatpush1.bf16.msra.mxu0 %v692
    %998 = vmatprep.subr.bf16.mxu0 0
    %999 = vmatpush1.bf16.msra.mxu0 %v693
    %1000 = vmatprep.subr.bf16.mxu0 0
    %1001 = vmatpush1.bf16.msra.mxu0 %v694
    %1002 = vmatprep.mubr.bf16.mxu0 %v38
    %1003 = vmatmul.mubr.bf16.gmra.mrb[0].mxu0 %v37
    %v1004 = vpop.f32.mrb[0].mxu0
    %v1005 = vadd.f32 %v956, %v1004
    %v1006 = vpop.f32.mrb[0].mxu0
    %v1007 = vpop.f32.mrb[0].mxu0
    %v1008 = vadd.f32 %v959, %v1007
    %v1009 = vpop.f32.mrb[0].mxu0
    %1010 = vmatprep.mubr.bf16.mxu0 %v50
    %1011 = vmatmul.mubr.bf16.gmra.mrb[0].mxu0 %v49
    %v1012 = vpop.f32.mrb[0].mxu0
    %v1013 = vadd.f32 %v964, %v1012
    %v1014 = vpop.f32.mrb[0].mxu0
    %v1015 = vpop.f32.mrb[0].mxu0
    %v1016 = vadd.f32 %v967, %v1015
    %v1017 = vpop.f32.mrb[0].mxu0
    %1018 = vdwg.mxu0
    %1019 = vmatprep.subr.bf16.mxu0 0
    %1020 = vmatpush1.bf16.msra.mxu0 %v695
    %1021 = vmatprep.subr.bf16.mxu0 0
    %1022 = vmatpush1.bf16.msra.mxu0 %v696
    %1023 = vmatprep.subr.bf16.mxu0 0
    %1024 = vmatpush1.bf16.msra.mxu0 %v697
    %1025 = vmatprep.subr.bf16.mxu0 0
    %1026 = vmatpush1.bf16.msra.mxu0 %v698
    %1027 = vmatprep.subr.bf16.mxu0 0
    %1028 = vmatpush1.bf16.msra.mxu0 %v699
    %1029 = vmatprep.subr.bf16.mxu0 0
    %1030 = vmatpush1.bf16.msra.mxu0 %v700
    %1031 = vmatprep.subr.bf16.mxu0 0
    %1032 = vmatpush1.bf16.msra.mxu0 %v701
    %1033 = vmatprep.subr.bf16.mxu0 0
    %1034 = vmatpush1.bf16.msra.mxu0 %v702
    %1035 = vmatprep.subr.bf16.mxu0 0
    %1036 = vmatpush1.bf16.msra.mxu0 %v703
    %1037 = vmatprep.subr.bf16.mxu0 0
    %1038 = vmatpush1.bf16.msra.mxu0 %v704
    %1039 = vmatprep.subr.bf16.mxu0 0
    %1040 = vmatpush1.bf16.msra.mxu0 %v705
    %1041 = vmatprep.subr.bf16.mxu0 0
    %1042 = vmatpush1.bf16.msra.mxu0 %v706
    %1043 = vmatprep.subr.bf16.mxu0 0
    %1044 = vmatpush1.bf16.msra.mxu0 %v707
    %1045 = vmatprep.subr.bf16.mxu0 0
    %1046 = vmatpush1.bf16.msra.mxu0 %v708
    %1047 = vmatprep.subr.bf16.mxu0 0
    %1048 = vmatpush1.bf16.msra.mxu0 %v709
    %1049 = vmatprep.subr.bf16.mxu0 0
    %1050 = vmatpush1.bf16.msra.mxu0 %v710
    %1051 = vmatprep.mubr.bf16.mxu0 %v40
    %1052 = vmatmul.mubr.bf16.gmra.mrb[0].mxu0 %v39
    %v1053 = vpop.f32.mrb[0].mxu0
    %v1054 = vadd.f32 %v1005, %v1053
    %v1055 = vpop.f32.mrb[0].mxu0
    %v1056 = vpop.f32.mrb[0].mxu0
    %v1057 = vadd.f32 %v1008, %v1056
    %v1058 = vpop.f32.mrb[0].mxu0
    %1059 = vmatprep.mubr.bf16.mxu0 %v52
    %1060 = vmatmul.mubr.bf16.gmra.mrb[0].mxu0 %v51
    %v1061 = vpop.f32.mrb[0].mxu0
    %v1062 = vadd.f32 %v1013, %v1061
    %v1063 = vpop.f32.mrb[0].mxu0
    %v1064 = vpop.f32.mrb[0].mxu0
    %v1065 = vadd.f32 %v1016, %v1064
    %v1066 = vpop.f32.mrb[0].mxu0
    %1067 = vdwg.mxu0
    %1068 = vmatprep.subr.bf16.mxu0 0
    %1069 = vmatpush1.bf16.msra.mxu0 %v711
    %1070 = vmatprep.subr.bf16.mxu0 0
    %1071 = vmatpush1.bf16.msra.mxu0 %v712
    %1072 = vmatprep.subr.bf16.mxu0 0
    %1073 = vmatpush1.bf16.msra.mxu0 %v713
    %1074 = vmatprep.subr.bf16.mxu0 0
    %1075 = vmatpush1.bf16.msra.mxu0 %v714
    %1076 = vmatprep.subr.bf16.mxu0 0
    %1077 = vmatpush1.bf16.msra.mxu0 %v715
    %1078 = vmatprep.subr.bf16.mxu0 0
    %1079 = vmatpush1.bf16.msra.mxu0 %v716
    %1080 = vmatprep.subr.bf16.mxu0 0
    %1081 = vmatpush1.bf16.msra.mxu0 %v717
    %1082 = vmatprep.subr.bf16.mxu0 0
    %1083 = vmatpush1.bf16.msra.mxu0 %v718
    %1084 = vmatprep.subr.bf16.mxu0 0
    %1085 = vmatpush1.bf16.msra.mxu0 %v719
    %1086 = vmatprep.subr.bf16.mxu0 0
    %1087 = vmatpush1.bf16.msra.mxu0 %v720
    %1088 = vmatprep.subr.bf16.mxu0 0
    %1089 = vmatpush1.bf16.msra.mxu0 %v721
    %1090 = vmatprep.subr.bf16.mxu0 0
    %1091 = vmatpush1.bf16.msra.mxu0 %v722
    %1092 = vmatprep.subr.bf16.mxu0 0
    %1093 = vmatpush1.bf16.msra.mxu0 %v723
    %1094 = vmatprep.subr.bf16.mxu0 0
    %1095 = vmatpush1.bf16.msra.mxu0 %v724
    %1096 = vmatprep.subr.bf16.mxu0 0
    %1097 = vmatpush1.bf16.msra.mxu0 %v725
    %1098 = vmatprep.subr.bf16.mxu0 0
    %1099 = vmatpush1.bf16.msra.mxu0 %v726
    %1100 = vmatprep.mubr.bf16.mxu0 %v42
    %1101 = vmatmul.mubr.bf16.gmra.mrb[0].mxu0 %v41
    %v1102 = vpop.f32.mrb[0].mxu0
    %v1103 = vadd.f32 %v1054, %v1102
    %v1104 = vpop.f32.mrb[0].mxu0
    %v1105 = vpop.f32.mrb[0].mxu0
    %v1106 = vadd.f32 %v1057, %v1105
    %v1107 = vpop.f32.mrb[0].mxu0
    %1108 = vmatprep.mubr.bf16.mxu0 %v54
    %1109 = vmatmul.mubr.bf16.gmra.mrb[0].mxu0 %v53
    %v1110 = vpop.f32.mrb[0].mxu0
    %v1111 = vadd.f32 %v1062, %v1110
    %v1112 = vpop.f32.mrb[0].mxu0
    %v1113 = vpop.f32.mrb[0].mxu0
    %v1114 = vadd.f32 %v1065, %v1113
    %v1115 = vpop.f32.mrb[0].mxu0
    %1116 = vdwg.mxu0
    %v1117 = vld [vmem:[%s2] sm:$0xff]
    %v1118 = vld [vmem:[%s2 + $0x8] sm:$0xff]
    %v1119 = vld [vmem:[%s2 + $0x10] sm:$0xff]
    %v1120 = vld [vmem:[%s2 + $0x18] sm:$0xff]
    %v1121 = vld [vmem:[%s2 + $0x20] sm:$0xff]
    %v1122 = vld [vmem:[%s2 + $0x28] sm:$0xff]
    %vm1123 = vcmask 195584
    %v1125 = vsel %vm1123, %v1103, 0
    %v1128 = vsel %vm1123, %v1106, 0
    %v1131 = vsel %vm1123, %v1111, 0
    %v1134 = vsel %vm1123, %v1114, 0
    %1136 = vmatprep.subr.mxu0 %v1118
    %1137 = vmatpush1.msra.mxu0 %v1117
    %1138 = vmatprep.subr.mxu0 %v1120
    %1139 = vmatpush1.msra.mxu0 %v1119
    %1140 = vmatprep.subr.mxu0 %v1122
    %1141 = vmatpush1.msra.mxu0 %v1121
    %1142 = vmatprep.subr.mxu0 0.0
    %1143 = vmatpush1.msra.mxu0 0.0
    %1144 = vmatprep.subr.mxu0 0.0
    %1145 = vmatpush1.msra.mxu0 0.0
    %1146 = vmatprep.subr.mxu0 0.0
    %1147 = vmatpush1.msra.mxu0 0.0
    %1148 = vmatprep.subr.mxu0 0.0
    %1149 = vmatpush1.msra.mxu0 0.0
    %1150 = vmatprep.subr.mxu0 0.0
    %1151 = vmatpush1.msra.mxu0 0.0
    %1152 = vmatprep.subr.mxu0 0.0
    %1153 = vmatpush1.msra.mxu0 0.0
    %1154 = vmatprep.subr.mxu0 0.0
    %1155 = vmatpush1.msra.mxu0 0.0
    %1156 = vmatprep.subr.mxu0 0.0
    %1157 = vmatpush1.msra.mxu0 0.0
    %1158 = vmatprep.subr.mxu0 0.0
    %1159 = vmatpush1.msra.mxu0 0.0
    %1160 = vmatprep.subr.mxu0 0.0
    %1161 = vmatpush1.msra.mxu0 0.0
    %1162 = vmatprep.subr.mxu0 0.0
    %1163 = vmatpush1.msra.mxu0 0.0
    %1164 = vmatprep.subr.mxu0 0.0
    %1165 = vmatpush1.msra.mxu0 0.0
    %1166 = vmatprep.subr.mxu0 0.0
    %1167 = vmatpush1.msra.mxu0 0.0
    %1168 = vmatprep.subr.mxu0 0.0
    %1169 = vmatpush1.msra.mxu0 0.0
    %1170 = vmatprep.subr.mxu0 0.0
    %1171 = vmatpush1.msra.mxu0 0.0
    %1172 = vmatprep.subr.mxu0 0.0
    %1173 = vmatpush1.msra.mxu0 0.0
    %1174 = vmatprep.subr.mxu0 0.0
    %1175 = vmatpush1.msra.mxu0 0.0
    %1176 = vmatprep.subr.mxu0 0.0
    %1177 = vmatpush1.msra.mxu0 0.0
    %1178 = vmatprep.subr.mxu0 0.0
    %1179 = vmatpush1.msra.mxu0 0.0
    %1180 = vmatprep.subr.mxu0 0.0
    %1181 = vmatpush1.msra.mxu0 0.0
    %1182 = vmatprep.subr.mxu0 0.0
    %1183 = vmatpush1.msra.mxu0 0.0
    %1184 = vmatprep.subr.mxu0 0.0
    %1185 = vmatpush1.msra.mxu0 0.0
    %1186 = vmatprep.subr.mxu0 0.0
    %1187 = vmatpush1.msra.mxu0 0.0
    %1188 = vmatprep.subr.mxu0 0.0
    %1189 = vmatpush1.msra.mxu0 0.0
    %1190 = vmatprep.subr.mxu0 0.0
    %1191 = vmatpush1.msra.mxu0 0.0
    %1192 = vmatprep.subr.mxu0 0.0
    %1193 = vmatpush1.msra.mxu0 0.0
    %1194 = vmatprep.subr.mxu0 0.0
    %1195 = vmatpush1.msra.mxu0 0.0
    %1196 = vmatprep.subr.mxu0 0.0
    %1197 = vmatpush1.msra.mxu0 0.0
    %1198 = vmatprep.subr.mxu0 0.0
    %1199 = vmatpush1.msra.mxu0 0.0
    %1200 = vmatprep.mubr.f32.mxu0 0.0
    %1201 = vmatmul.mubr.f32.gmra.mrb[0].mxu0 %v1125
    %v1202 = vpop.f32.mrb[0].mxu0
    %v1203 = vadd.f32 0.0, %v1202
    %v1204 = vpop.f32.mrb[0].mxu0
    %v1205 = vadd.f32 0.0, %v1204
    %1206 = vmatprep.mubr.f32.mxu0 0.0
    %1207 = vmatmul.mubr.f32.gmra.mrb[0].mxu0 %v1128
    %v1208 = vpop.f32.mrb[0].mxu0
    %v1209 = vadd.f32 0.0, %v1208
    %v1210 = vpop.f32.mrb[0].mxu0
    %v1211 = vadd.f32 0.0, %v1210
    %1212 = vmatprep.mubr.f32.mxu0 0.0
    %1213 = vmatmul.mubr.f32.gmra.mrb[0].mxu0 %v1131
    %v1214 = vpop.f32.mrb[0].mxu0
    %v1215 = vadd.f32 0.0, %v1214
    %v1216 = vpop.f32.mrb[0].mxu0
    %v1217 = vadd.f32 0.0, %v1216
    %1218 = vmatprep.mubr.f32.mxu0 0.0
    %1219 = vmatmul.mubr.f32.gmra.mrb[0].mxu0 %v1134
    %v1220 = vpop.f32.mrb[0].mxu0
    %v1221 = vadd.f32 0.0, %v1220
    %v1222 = vpop.f32.mrb[0].mxu0
    %v1223 = vadd.f32 0.0, %v1222
    %1224 = vdwg.mxu0
    %v1225 = vmul.f32 %v1203, %v1203
    %v1226 = vmul.f32 %v1205, %v1205
    %v1227 = vmul.f32 %v1209, %v1209
    %v1228 = vmul.f32 %v1211, %v1211
    %v1229 = vmul.f32 %v1215, %v1215
    %v1230 = vmul.f32 %v1217, %v1217
    %v1231 = vmul.f32 %v1221, %v1221
    %v1232 = vmul.f32 %v1223, %v1223
    %v1233 = vld [vmem:[%s3] sm:$0xff]
    %v1234 = vld [vmem:[%s3 + $0x8] sm:$0xff]
    %v1235 = vld [vmem:[%s3 + $0x10] sm:$0xff]
    %v1236 = vld [vmem:[%s3 + $0x18] sm:$0xff]
    %v1237 = vld [vmem:[%s3 + $0x20] sm:$0xff]
    %v1238 = vld [vmem:[%s3 + $0x28] sm:$0xff]
    %v1239 = vld [vmem:[%s3 + $0x30] sm:$0xff]
    %v1240 = vld [vmem:[%s3 + $0x38] sm:$0xff]
    %v1241 = vld [vmem:[%s3 + $0x40] sm:$0xff]
    %v1242 = vld [vmem:[%s3 + $0x48] sm:$0xff]
    %v1243 = vld [vmem:[%s3 + $0x50] sm:$0xff]
    %v1244 = vld [vmem:[%s3 + $0x58] sm:$0xff]
    %v1245 = vld [vmem:[%s3 + $0x60] sm:$0xff]
    %v1246 = vld [vmem:[%s3 + $0x68] sm:$0xff]
    %v1247 = vld [vmem:[%s3 + $0x70] sm:$0xff]
    %v1248 = vld [vmem:[%s3 + $0x78] sm:$0xff]
    %v1249 = vld [vmem:[%s3 + $0x80] sm:$0xff]
    %v1250 = vld [vmem:[%s3 + $0x88] sm:$0xff]
    %v1251 = vld [vmem:[%s3 + $0x90] sm:$0xff]
    %v1252 = vld [vmem:[%s3 + $0x98] sm:$0xff]
    %v1253 = vld [vmem:[%s3 + $0xa0] sm:$0xff]
    %v1254 = vld [vmem:[%s3 + $0xa8] sm:$0xff]
    %v1255 = vld [vmem:[%s3 + $0xb0] sm:$0xff]
    %v1256 = vld [vmem:[%s3 + $0xb8] sm:$0xff]
    %v1257 = vld [vmem:[%s3 + $0xc0] sm:$0xff]
    %v1258 = vld [vmem:[%s3 + $0xc8] sm:$0xff]
    %v1259 = vld [vmem:[%s3 + $0xd0] sm:$0xff]
    %v1260 = vld [vmem:[%s3 + $0xd8] sm:$0xff]
    %v1261 = vld [vmem:[%s3 + $0xe0] sm:$0xff]
    %v1262 = vld [vmem:[%s3 + $0xe8] sm:$0xff]
    %v1263 = vld [vmem:[%s3 + $0xf0] sm:$0xff]
    %v1264 = vld [vmem:[%s3 + $0xf8] sm:$0xff]
    %1265 = vmatprep.subr.mxu0 0.0
    %1266 = vmatpush1.msra.mxu0 %v1233
    %1267 = vmatprep.subr.mxu0 0.0
    %1268 = vmatpush1.msra.mxu0 %v1234
    %1269 = vmatprep.subr.mxu0 0.0
    %1270 = vmatpush1.msra.mxu0 %v1235
    %1271 = vmatprep.subr.mxu0 0.0
    %1272 = vmatpush1.msra.mxu0 %v1236
    %1273 = vmatprep.subr.mxu0 0.0
    %1274 = vmatpush1.msra.mxu0 %v1237
    %1275 = vmatprep.subr.mxu0 0.0
    %1276 = vmatpush1.msra.mxu0 %v1238
    %1277 = vmatprep.subr.mxu0 0.0
    %1278 = vmatpush1.msra.mxu0 %v1239
    %1279 = vmatprep.subr.mxu0 0.0
    %1280 = vmatpush1.msra.mxu0 %v1240
    %1281 = vmatprep.subr.mxu0 0.0
    %1282 = vmatpush1.msra.mxu0 %v1241
    %1283 = vmatprep.subr.mxu0 0.0
    %1284 = vmatpush1.msra.mxu0 %v1242
    %1285 = vmatprep.subr.mxu0 0.0
    %1286 = vmatpush1.msra.mxu0 %v1243
    %1287 = vmatprep.subr.mxu0 0.0
    %1288 = vmatpush1.msra.mxu0 %v1244
    %1289 = vmatprep.subr.mxu0 0.0
    %1290 = vmatpush1.msra.mxu0 %v1245
    %1291 = vmatprep.subr.mxu0 0.0
    %1292 = vmatpush1.msra.mxu0 %v1246
    %1293 = vmatprep.subr.mxu0 0.0
    %1294 = vmatpush1.msra.mxu0 %v1247
    %1295 = vmatprep.subr.mxu0 0.0
    %1296 = vmatpush1.msra.mxu0 %v1248
    %1297 = vmatprep.subr.mxu0 0.0
    %1298 = vmatpush1.msra.mxu0 %v1249
    %1299 = vmatprep.subr.mxu0 0.0
    %1300 = vmatpush1.msra.mxu0 %v1250
    %1301 = vmatprep.subr.mxu0 0.0
    %1302 = vmatpush1.msra.mxu0 %v1251
    %1303 = vmatprep.subr.mxu0 0.0
    %1304 = vmatpush1.msra.mxu0 %v1252
    %1305 = vmatprep.subr.mxu0 0.0
    %1306 = vmatpush1.msra.mxu0 %v1253
    %1307 = vmatprep.subr.mxu0 0.0
    %1308 = vmatpush1.msra.mxu0 %v1254
    %1309 = vmatprep.subr.mxu0 0.0
    %1310 = vmatpush1.msra.mxu0 %v1255
    %1311 = vmatprep.subr.mxu0 0.0
    %1312 = vmatpush1.msra.mxu0 %v1256
    %1313 = vmatprep.subr.mxu0 0.0
    %1314 = vmatpush1.msra.mxu0 %v1257
    %1315 = vmatprep.subr.mxu0 0.0
    %1316 = vmatpush1.msra.mxu0 %v1258
    %1317 = vmatprep.subr.mxu0 0.0
    %1318 = vmatpush1.msra.mxu0 %v1259
    %1319 = vmatprep.subr.mxu0 0.0
    %1320 = vmatpush1.msra.mxu0 %v1260
    %1321 = vmatprep.subr.mxu0 0.0
    %1322 = vmatpush1.msra.mxu0 %v1261
    %1323 = vmatprep.subr.mxu0 0.0
    %1324 = vmatpush1.msra.mxu0 %v1262
    %1325 = vmatprep.subr.mxu0 0.0
    %1326 = vmatpush1.msra.mxu0 %v1263
    %1327 = vmatprep.subr.mxu0 0.0
    %1328 = vmatpush1.msra.mxu0 %v1264
    %1329 = vmatprep.mubr.f32.mxu0 %v1226
    %1330 = vmatmul.mubr.f32.gmra.mrb[0].mxu0 %v1225
    %v1331 = vpop.f32.mrb[0].mxu0
    %v1332 = vadd.f32 0.0, %v1331
    %v1333 = vpop.f32.mrb[0].mxu0
    %1334 = vmatprep.mubr.f32.mxu0 %v1228
    %1335 = vmatmul.mubr.f32.gmra.mrb[0].mxu0 %v1227
    %v1336 = vpop.f32.mrb[0].mxu0
    %v1337 = vadd.f32 0.0, %v1336
    %v1338 = vpop.f32.mrb[0].mxu0
    %1339 = vmatprep.mubr.f32.mxu0 %v1230
    %1340 = vmatmul.mubr.f32.gmra.mrb[0].mxu0 %v1229
    %v1341 = vpop.f32.mrb[0].mxu0
    %v1342 = vadd.f32 0.0, %v1341
    %v1343 = vpop.f32.mrb[0].mxu0
    %1344 = vmatprep.mubr.f32.mxu0 %v1232
    %1345 = vmatmul.mubr.f32.gmra.mrb[0].mxu0 %v1231
    %v1346 = vpop.f32.mrb[0].mxu0
    %v1347 = vadd.f32 0.0, %v1346
    %v1348 = vpop.f32.mrb[0].mxu0
    %1349 = vdwg.mxu0
    %v1350 = vmul.f32 %v1332, 6.0
    %v1351 = vmul.f32 %v1337, 6.0
    %v1352 = vmul.f32 %v1342, 6.0
    %v1353 = vmul.f32 %v1347, 6.0
    %v1354 = vadd.f32 %v1350, 1e-12
    %v1355 = vadd.f32 %v1351, 1e-12
    %v1356 = vadd.f32 %v1352, 1e-12
    %v1357 = vadd.f32 %v1353, 1e-12
    %v1358 = vrsqrt.pop %v1354
    %v1359 = vrsqrt.pop %v1355
    %v1360 = vrsqrt.pop %v1356
    %v1361 = vrsqrt.pop %v1357
    %1366 = vrot.lane.b32.xlu0 %v1358, 8
    %v1367 = vpop.permute.xlu0 %1366
    %1368 = vrot.lane.b32.xlu0 %v1359, 8
    %v1369 = vpop.permute.xlu0 %1368
    %1370 = vrot.lane.b32.xlu0 %v1360, 8
    %v1371 = vpop.permute.xlu0 %1370
    %1372 = vrot.lane.b32.xlu0 %v1361, 8
    %v1373 = vpop.permute.xlu0 %1372
    %1378 = vrot.lane.b32.xlu0 %v1358, 16
    %v1379 = vpop.permute.xlu0 %1378
    %1380 = vrot.lane.b32.xlu0 %v1359, 16
    %v1381 = vpop.permute.xlu0 %1380
    %1382 = vrot.lane.b32.xlu0 %v1360, 16
    %v1383 = vpop.permute.xlu0 %1382
    %1384 = vrot.lane.b32.xlu0 %v1361, 16
    %v1385 = vpop.permute.xlu0 %1384
    %1390 = vrot.lane.b32.xlu0 %v1358, 24
    %v1391 = vpop.permute.xlu0 %1390
    %1392 = vrot.lane.b32.xlu0 %v1359, 24
    %v1393 = vpop.permute.xlu0 %1392
    %1394 = vrot.lane.b32.xlu0 %v1360, 24
    %v1395 = vpop.permute.xlu0 %1394
    %1396 = vrot.lane.b32.xlu0 %v1361, 24
    %v1397 = vpop.permute.xlu0 %1396
    %1402 = vrot.lane.b32.xlu0 %v1358, 32
    %v1403 = vpop.permute.xlu0 %1402
    %1404 = vrot.lane.b32.xlu0 %v1359, 32
    %v1405 = vpop.permute.xlu0 %1404
    %1406 = vrot.lane.b32.xlu0 %v1360, 32
    %v1407 = vpop.permute.xlu0 %1406
    %1408 = vrot.lane.b32.xlu0 %v1361, 32
    %v1409 = vpop.permute.xlu0 %1408
    %1414 = vrot.lane.b32.xlu0 %v1358, 40
    %v1415 = vpop.permute.xlu0 %1414
    %1416 = vrot.lane.b32.xlu0 %v1359, 40
    %v1417 = vpop.permute.xlu0 %1416
    %1418 = vrot.lane.b32.xlu0 %v1360, 40
    %v1419 = vpop.permute.xlu0 %1418
    %1420 = vrot.lane.b32.xlu0 %v1361, 40
    %v1421 = vpop.permute.xlu0 %1420
    %1426 = vrot.lane.b32.xlu0 %v1358, 48
    %v1427 = vpop.permute.xlu0 %1426
    %1428 = vrot.lane.b32.xlu0 %v1359, 48
    %v1429 = vpop.permute.xlu0 %1428
    %1430 = vrot.lane.b32.xlu0 %v1360, 48
    %v1431 = vpop.permute.xlu0 %1430
    %1432 = vrot.lane.b32.xlu0 %v1361, 48
    %v1433 = vpop.permute.xlu0 %1432
    %1438 = vrot.lane.b32.xlu0 %v1358, 56
    %v1439 = vpop.permute.xlu0 %1438
    %1440 = vrot.lane.b32.xlu0 %v1359, 56
    %v1441 = vpop.permute.xlu0 %1440
    %1442 = vrot.lane.b32.xlu0 %v1360, 56
    %v1443 = vpop.permute.xlu0 %1442
    %1444 = vrot.lane.b32.xlu0 %v1361, 56
    %v1445 = vpop.permute.xlu0 %1444
    %1450 = vrot.lane.b32.xlu0 %v1358, 64
    %v1451 = vpop.permute.xlu0 %1450
    %1452 = vrot.lane.b32.xlu0 %v1359, 64
    %v1453 = vpop.permute.xlu0 %1452
    %1454 = vrot.lane.b32.xlu0 %v1360, 64
    %v1455 = vpop.permute.xlu0 %1454
    %1456 = vrot.lane.b32.xlu0 %v1361, 64
    %v1457 = vpop.permute.xlu0 %1456
    %1462 = vrot.lane.b32.xlu0 %v1358, 72
    %v1463 = vpop.permute.xlu0 %1462
    %1464 = vrot.lane.b32.xlu0 %v1359, 72
    %v1465 = vpop.permute.xlu0 %1464
    %1466 = vrot.lane.b32.xlu0 %v1360, 72
    %v1467 = vpop.permute.xlu0 %1466
    %1468 = vrot.lane.b32.xlu0 %v1361, 72
    %v1469 = vpop.permute.xlu0 %1468
    %1474 = vrot.lane.b32.xlu0 %v1358, 80
    %v1475 = vpop.permute.xlu0 %1474
    %1476 = vrot.lane.b32.xlu0 %v1359, 80
    %v1477 = vpop.permute.xlu0 %1476
    %1478 = vrot.lane.b32.xlu0 %v1360, 80
    %v1479 = vpop.permute.xlu0 %1478
    %1480 = vrot.lane.b32.xlu0 %v1361, 80
    %v1481 = vpop.permute.xlu0 %1480
    %1486 = vrot.lane.b32.xlu0 %v1358, 88
    %v1487 = vpop.permute.xlu0 %1486
    %1488 = vrot.lane.b32.xlu0 %v1359, 88
    %v1489 = vpop.permute.xlu0 %1488
    %1490 = vrot.lane.b32.xlu0 %v1360, 88
    %v1491 = vpop.permute.xlu0 %1490
    %1492 = vrot.lane.b32.xlu0 %v1361, 88
    %v1493 = vpop.permute.xlu0 %1492
    %1498 = vrot.lane.b32.xlu0 %v1358, 96
    %v1499 = vpop.permute.xlu0 %1498
    %1500 = vrot.lane.b32.xlu0 %v1359, 96
    %v1501 = vpop.permute.xlu0 %1500
    %1502 = vrot.lane.b32.xlu0 %v1360, 96
    %v1503 = vpop.permute.xlu0 %1502
    %1504 = vrot.lane.b32.xlu0 %v1361, 96
    %v1505 = vpop.permute.xlu0 %1504
    %1510 = vrot.lane.b32.xlu0 %v1358, 104
    %v1511 = vpop.permute.xlu0 %1510
    %1512 = vrot.lane.b32.xlu0 %v1359, 104
    %v1513 = vpop.permute.xlu0 %1512
    %1514 = vrot.lane.b32.xlu0 %v1360, 104
    %v1515 = vpop.permute.xlu0 %1514
    %1516 = vrot.lane.b32.xlu0 %v1361, 104
    %v1517 = vpop.permute.xlu0 %1516
    %1522 = vrot.lane.b32.xlu0 %v1358, 112
    %v1523 = vpop.permute.xlu0 %1522
    %1524 = vrot.lane.b32.xlu0 %v1359, 112
    %v1525 = vpop.permute.xlu0 %1524
    %1526 = vrot.lane.b32.xlu0 %v1360, 112
    %v1527 = vpop.permute.xlu0 %1526
    %1528 = vrot.lane.b32.xlu0 %v1361, 112
    %v1529 = vpop.permute.xlu0 %1528
    %1534 = vrot.lane.b32.xlu0 %v1358, 120
    %v1535 = vpop.permute.xlu0 %1534
    %1536 = vrot.lane.b32.xlu0 %v1359, 120
    %v1537 = vpop.permute.xlu0 %1536
    %1538 = vrot.lane.b32.xlu0 %v1360, 120
    %v1539 = vpop.permute.xlu0 %1538
    %1540 = vrot.lane.b32.xlu0 %v1361, 120
    %v1541 = vpop.permute.xlu0 %1540
    %vm1546 = vcmask 64512
    %v1547 = vsel %vm1546, %v1358, %v1367
    %v1548 = vsel %vm1546, %v1359, %v1369
    %v1549 = vsel %vm1546, %v1360, %v1371
    %v1550 = vsel %vm1546, %v1361, %v1373
    %vm1551 = vcmask 130048
    %v1552 = vsel %vm1551, %v1547, %v1379
    %v1553 = vsel %vm1551, %v1548, %v1381
    %v1554 = vsel %vm1551, %v1549, %v1383
    %v1555 = vsel %vm1551, %v1550, %v1385
    %v1556 = vsel %vm1123, %v1552, %v1391
    %v1557 = vsel %vm1123, %v1553, %v1393
    %v1558 = vsel %vm1123, %v1554, %v1395
    %v1559 = vsel %vm1123, %v1555, %v1397
    %vm1560 = vcmask 261120
    %v1561 = vsel %vm1560, %v1556, %v1403
    %v1562 = vsel %vm1560, %v1557, %v1405
    %v1563 = vsel %vm1560, %v1558, %v1407
    %v1564 = vsel %vm1560, %v1559, %v1409
    %vm1565 = vcmask 326656
    %v1566 = vsel %vm1565, %v1561, %v1415
    %v1567 = vsel %vm1565, %v1562, %v1417
    %v1568 = vsel %vm1565, %v1563, %v1419
    %v1569 = vsel %vm1565, %v1564, %v1421
    %vm1570 = vcmask 392192
    %v1571 = vsel %vm1570, %v1566, %v1427
    %v1572 = vsel %vm1570, %v1567, %v1429
    %v1573 = vsel %vm1570, %v1568, %v1431
    %v1574 = vsel %vm1570, %v1569, %v1433
    %vm1575 = vcmask 457728
    %v1576 = vsel %vm1575, %v1571, %v1439
    %v1577 = vsel %vm1575, %v1572, %v1441
    %v1578 = vsel %vm1575, %v1573, %v1443
    %v1579 = vsel %vm1575, %v1574, %v1445
    %vm1580 = vcmask 523264
    %v1581 = vsel %vm1580, %v1576, %v1451
    %v1582 = vsel %vm1580, %v1577, %v1453
    %v1583 = vsel %vm1580, %v1578, %v1455
    %v1584 = vsel %vm1580, %v1579, %v1457
    %vm1585 = vcmask 588800
    %v1586 = vsel %vm1585, %v1581, %v1463
    %v1587 = vsel %vm1585, %v1582, %v1465
    %v1588 = vsel %vm1585, %v1583, %v1467
    %v1589 = vsel %vm1585, %v1584, %v1469
    %vm1590 = vcmask 654336
    %v1591 = vsel %vm1590, %v1586, %v1475
    %v1592 = vsel %vm1590, %v1587, %v1477
    %v1593 = vsel %vm1590, %v1588, %v1479
    %v1594 = vsel %vm1590, %v1589, %v1481
    %vm1595 = vcmask 719872
    %v1596 = vsel %vm1595, %v1591, %v1487
    %v1597 = vsel %vm1595, %v1592, %v1489
    %v1598 = vsel %vm1595, %v1593, %v1491
    %v1599 = vsel %vm1595, %v1594, %v1493
    %vm1600 = vcmask 785408
    %v1601 = vsel %vm1600, %v1596, %v1499
    %v1602 = vsel %vm1600, %v1597, %v1501
    %v1603 = vsel %vm1600, %v1598, %v1503
    %v1604 = vsel %vm1600, %v1599, %v1505
    %vm1605 = vcmask 850944
    %v1606 = vsel %vm1605, %v1601, %v1511
    %v1607 = vsel %vm1605, %v1602, %v1513
    %v1608 = vsel %vm1605, %v1603, %v1515
    %v1609 = vsel %vm1605, %v1604, %v1517
    %vm1610 = vcmask 916480
    %v1611 = vsel %vm1610, %v1606, %v1523
    %v1612 = vsel %vm1610, %v1607, %v1525
    %v1613 = vsel %vm1610, %v1608, %v1527
    %v1614 = vsel %vm1610, %v1609, %v1529
    %vm1615 = vcmask 982016
    %v1616 = vsel %vm1615, %v1611, %v1535
    %v1617 = vsel %vm1615, %v1612, %v1537
    %v1618 = vsel %vm1615, %v1613, %v1539
    %v1619 = vsel %vm1615, %v1614, %v1541
    %v1620 = vmul.f32 %v1203, %v1616
    %v1621 = vmul.f32 %v1205, %v1616
    %v1622 = vmul.f32 %v1209, %v1617
    %v1623 = vmul.f32 %v1211, %v1617
    %v1624 = vmul.f32 %v1215, %v1618
    %v1625 = vmul.f32 %v1217, %v1618
    %v1626 = vmul.f32 %v1221, %v1619
    %v1627 = vmul.f32 %v1223, %v1619
    %1628 = vst [vmem:[#allocation2] sm:$0xff] %v1620
    %1629 = vst [vmem:[#allocation2 + $0x8] sm:$0xff] %v1621
    %1630 = vst [vmem:[#allocation2 + $0x10] sm:$0xff] %v1622
    %1631 = vst [vmem:[#allocation2 + $0x18] sm:$0xff] %v1623
    %1632 = vst [vmem:[#allocation2 + $0x20] sm:$0xff] %v1624
    %1633 = vst [vmem:[#allocation2 + $0x28] sm:$0xff] %v1625
    %1634 = vst [vmem:[#allocation2 + $0x30] sm:$0xff] %v1626
    %1635 = vst [vmem:[#allocation2 + $0x38] sm:$0xff] %v1627
    // Predicated region
    $region18: #{tpu_custom_call.1} parent=1 // pred_check
      _
    $region19: #{tpu_custom_call.1} parent=1 // pred_check_branch
      %1637 = sbr.rel (0) target = $region21
    $region20: #{tpu_custom_call.1} parent=1 // pred_region
      %s1639 = ssub.s32 1024, 1024
      %1640 = vsyncadd [#allocation3], %s1639
      %s1641 = sshll.u32 [#allocation2], 4
      %s1642 = int_to_ptr.vmem [resolvable:$true] %s1641
      %1647 = dma.vmem_to_hbm [thread:$0]  %s1642, 1024, %s4, [#allocation3], 256, 256, 16
    $region21: #{tpu_custom_call.1} parent=1 // pred_fallthru
      _
    // Predicated region
    $region22: #{tpu_custom_call.1} parent=1 // pred_check
      _
    $region23: #{tpu_custom_call.1} parent=1 // pred_check_branch
      %1649 = sbr.rel (0) target = $region25
    $region24: #{tpu_custom_call.1} parent=1 // pred_region
      %1650 = dma.done [#allocation3], 1024
    $region25: #{tpu_custom_call.1} parent=1 // pred_fallthru
      _
    %1651 = vsyncpa [#allocation3], 1

</llo_original>
